<compile_context>
chip_gen: v7x
topology: tpu7x:2x2x1
jax: 0.10.0
libtpu: 0.0.40
codegen_flags: <defaults>
</compile_context>

<pallas_src>
import functools

import jax
import jax.numpy as jnp
from jax.experimental import pallas as pl
from jax.experimental.pallas import tpu as pltpu

# params['_M'] is not given in the snippet; pick a deterministic small value.
_M = 8
IN_DIM = 1024
HIDDEN = 512
OUT_DIM = 2 * _M + 1   # 17 (true output width of fc2)
OUT_PAD = 128          # lane-dense padded output width used inside the kernel


def _round_up(x, m):
    return (x + m - 1) // m * m


def fc_kernel(x_ref, w1_ref, b1_ref, w2_ref, b2_ref, o_ref):
    # fc1 on the MXU: (TM, IN_DIM) bf16 @ (IN_DIM, HIDDEN) bf16 -> f32 accumulate
    h = jnp.dot(x_ref[...], w1_ref[...], preferred_element_type=jnp.float32)
    h = jnp.tanh(h + b1_ref[...])                       # bias + tanh (EUP) in f32
    # fc2: (TM, HIDDEN) bf16 @ (HIDDEN, OUT_PAD) bf16 -> f32 accumulate
    out = jnp.dot(h.astype(w2_ref.dtype), w2_ref[...],
                  preferred_element_type=jnp.float32)
    o_ref[...] = (out + b2_ref[...]).astype(o_ref.dtype)


@functools.partial(jax.jit, static_argnames=("tm",))
def fc_forward(x, w1, b1, w2, b2, *, tm=128):
    """x: (B, IN_DIM) f32; w1: (IN_DIM, HIDDEN); b1: (1, HIDDEN);
    w2: (HIDDEN, OUT_DIM); b2: (1, OUT_DIM) -> (B, OUT_DIM) f32."""
    B = x.shape[0]
    # Batch tile: multiple of 8 (sublane), capped at `tm` (128: good on v5e, fine
    # on v6e/v7x; x tile = TM*1024*2B ~= 256 KiB double-buffered, weights ~1.1 MiB
    # single-buffered -> comfortably within v7x's 32 MiB default scoped VMEM).
    tm = min(tm, _round_up(max(B, 1), 8))
    pb = _round_up(B, tm)

    # Pad batch + output width, cast matmul operands to bf16 (f32 accumulation).
    x_p = jnp.zeros((pb, IN_DIM), jnp.bfloat16).at[:B].set(x.astype(jnp.bfloat16))
    w1_b = w1.astype(jnp.bfloat16)
    w2_p = jnp.zeros((HIDDEN, OUT_PAD), jnp.bfloat16).at[:, :OUT_DIM].set(
        w2.astype(jnp.bfloat16))
    b1_r = b1.reshape(1, HIDDEN).astype(jnp.float32)
    b2_p = jnp.zeros((1, OUT_PAD), jnp.float32).at[:, :OUT_DIM].set(
        b2.reshape(1, OUT_DIM).astype(jnp.float32))

    grid = (pb // tm,)
    flops = 2 * pb * (IN_DIM * HIDDEN + HIDDEN * OUT_PAD)
    bytes_accessed = (x_p.size * 2 + w1_b.size * 2 + w2_p.size * 2
                      + b1_r.size * 4 + b2_p.size * 4 + pb * OUT_PAD * 4)

    out = pl.pallas_call(
        fc_kernel,
        out_shape=jax.ShapeDtypeStruct((pb, OUT_PAD), jnp.float32),
        grid=grid,
        in_specs=[
            pl.BlockSpec((tm, IN_DIM), lambda i: (i, 0)),        # x tile (pipelined)
            pl.BlockSpec((IN_DIM, HIDDEN), lambda i: (0, 0)),    # w1 (VMEM-resident)
            pl.BlockSpec((1, HIDDEN), lambda i: (0, 0)),         # b1 (resident)
            pl.BlockSpec((HIDDEN, OUT_PAD), lambda i: (0, 0)),   # w2 (resident)
            pl.BlockSpec((1, OUT_PAD), lambda i: (0, 0)),        # b2 (resident)
        ],
        out_specs=pl.BlockSpec((tm, OUT_PAD), lambda i: (i, 0)),
        compiler_params=pltpu.CompilerParams(
            dimension_semantics=("parallel",)),
        cost_estimate=pl.CostEstimate(
            flops=flops,
            transcendentals=pb * HIDDEN,
            bytes_accessed=bytes_accessed),
    )(x_p, w1_b, b1_r, w2_p, b2_p)

    # Slice away batch padding and the padded output columns.
    return out[:B, :OUT_DIM]


def init_params(key):
    """Deterministic init mimicking PyTorch nn.Linear default:
    U(-1/sqrt(fan_in), 1/sqrt(fan_in)) for both weight and bias.
    Weights stored as (in_features, out_features) == transpose of PyTorch layout."""
    k1, k2, k3, k4 = jax.random.split(key, 4)
    bound1 = 1.0 / jnp.sqrt(IN_DIM)
    bound2 = 1.0 / jnp.sqrt(HIDDEN)
    w1 = jax.random.uniform(k1, (IN_DIM, HIDDEN), jnp.float32, -bound1, bound1)
    b1 = jax.random.uniform(k2, (1, HIDDEN), jnp.float32, -bound1, bound1)
    w2 = jax.random.uniform(k3, (HIDDEN, OUT_DIM), jnp.float32, -bound2, bound2)
    b2 = jax.random.uniform(k4, (1, OUT_DIM), jnp.float32, -bound2, bound2)
    return w1, b1, w2, b2


if __name__ == "__main__":
    key = jax.random.PRNGKey(0)
    kx, kp = jax.random.split(key)
    w1, b1, w2, b2 = init_params(kp)

    # Small batch (single grid step) and a batch that exercises the tiled grid.
    for batch in (8, 200):
        kx, sub = jax.random.split(kx)
        x = jax.random.normal(sub, (batch, IN_DIM), jnp.float32)

        out = jax.block_until_ready(fc_forward(x, w1, b1, w2, b2))

        # f32 reference in plain JAX (kernel runs bf16 operands, f32 accumulation,
        # so tolerance is loosened accordingly).
        ref = jnp.tanh(x @ w1 + b1) @ w2 + b2
        assert out.shape == (batch, OUT_DIM), out.shape
        assert jnp.allclose(out, ref, atol=5e-2, rtol=5e-2), \
            float(jnp.max(jnp.abs(out - ref)))

    print("KERNEL_OK")
</pallas_src>

<mosaic_0001>
module attributes {stable_mosaic.version = 11 : i64} {
  func.func @fc_kernel(%arg0: i32, %arg1: memref<8x1024xbf16, #tpu.memory_space<vmem>>, %arg2: memref<1024x512xbf16, #tpu.memory_space<vmem>>, %arg3: memref<1x512xf32, #tpu.memory_space<vmem>>, %arg4: memref<512x128xbf16, #tpu.memory_space<vmem>>, %arg5: memref<1x128xf32, #tpu.memory_space<vmem>>, %arg6: memref<8x128xf32, #tpu.memory_space<vmem>>) attributes {dimension_semantics = [#tpu.dimension_semantics<parallel>], iteration_bounds = array<i64: 1>, scalar_prefetch = 0 : i64, scratch_operands = 0 : i64, tpu.core_type = #tpu.core_type<tc>, window_params = [{transform_indices = @transform_0, window_bounds = array<i64: 8, 1024>}, {pipeline_mode = #tpu.pipeline_mode<synchronous>, transform_indices = @transform_1, window_bounds = array<i64: 1024, 512>}, {pipeline_mode = #tpu.pipeline_mode<synchronous>, transform_indices = @transform_2, window_bounds = array<i64: 1, 512>}, {pipeline_mode = #tpu.pipeline_mode<synchronous>, transform_indices = @transform_3, window_bounds = array<i64: 512, 128>}, {pipeline_mode = #tpu.pipeline_mode<synchronous>, transform_indices = @transform_4, window_bounds = array<i64: 1, 128>}, {transform_indices = @transform_5, window_bounds = array<i64: 8, 128>}]} {
    %c0 = arith.constant 0 : index
    %c0_0 = arith.constant 0 : index
    %0 = vector.load %arg1[%c0, %c0_0] : memref<8x1024xbf16, #tpu.memory_space<vmem>>, vector<8x1024xbf16>
    %c0_1 = arith.constant 0 : index
    %c0_2 = arith.constant 0 : index
    %1 = vector.load %arg2[%c0_1, %c0_2] : memref<1024x512xbf16, #tpu.memory_space<vmem>>, vector<1024x512xbf16>
    %cst = arith.constant dense<0.000000e+00> : vector<8x512xf32>
    %2 = tpu.matmul %0, %1, %cst {dimension_numbers = #tpu.dot_dimension_numbers<[1], [0], [0], [1], [0, 0, 1, 1], [], []>} : vector<8x1024xbf16>, vector<1024x512xbf16>, vector<8x512xf32> -> vector<8x512xf32>
    %c0_3 = arith.constant 0 : index
    %c0_4 = arith.constant 0 : index
    %3 = vector.load %arg3[%c0_3, %c0_4] : memref<1x512xf32, #tpu.memory_space<vmem>>, vector<1x512xf32>
    %4 = vector.broadcast %3 : vector<1x512xf32> to vector<8x512xf32>
    %5 = arith.addf %2, %4 : vector<8x512xf32>
    %6 = math.tanh %5 : vector<8x512xf32>
    %7 = arith.truncf %6 : vector<8x512xf32> to vector<8x512xbf16>
    %c0_5 = arith.constant 0 : index
    %c0_6 = arith.constant 0 : index
    %8 = vector.load %arg4[%c0_5, %c0_6] : memref<512x128xbf16, #tpu.memory_space<vmem>>, vector<512x128xbf16>
    %cst_7 = arith.constant dense<0.000000e+00> : vector<8x128xf32>
    %9 = tpu.matmul %7, %8, %cst_7 {dimension_numbers = #tpu.dot_dimension_numbers<[1], [0], [0], [1], [0, 0, 1, 1], [], []>} : vector<8x512xbf16>, vector<512x128xbf16>, vector<8x128xf32> -> vector<8x128xf32>
    %c0_8 = arith.constant 0 : index
    %c0_9 = arith.constant 0 : index
    %10 = vector.load %arg5[%c0_8, %c0_9] : memref<1x128xf32, #tpu.memory_space<vmem>>, vector<1x128xf32>
    %11 = vector.broadcast %10 : vector<1x128xf32> to vector<8x128xf32>
    %12 = arith.addf %9, %11 : vector<8x128xf32>
    %c0_10 = arith.constant 0 : index
    %c0_11 = arith.constant 0 : index
    %13 = vector.load %arg6[%c0_10, %c0_11] : memref<8x128xf32, #tpu.memory_space<vmem>>, vector<8x128xf32>
    tpu.vector_store %arg6[%c0_10, %c0_11], %12 {strides = array<i32>} : memref<8x128xf32, #tpu.memory_space<vmem>>, vector<8x128xf32>,
    return
  }
  func.func @transform_0(%arg0: i32) -> (i32, i32) {
    %c0_i32 = arith.constant 0 : i32
    %c0_i32_0 = arith.constant 0 : i32
    return %arg0, %c0_i32 : i32, i32
  }
  func.func @transform_1(%arg0: i32) -> (i32, i32) {
    %c0_i32 = arith.constant 0 : i32
    %c0_i32_0 = arith.constant 0 : i32
    %c0_i32_1 = arith.constant 0 : i32
    return %c0_i32, %c0_i32_0 : i32, i32
  }
  func.func @transform_2(%arg0: i32) -> (i32, i32) {
    %c0_i32 = arith.constant 0 : i32
    %c0_i32_0 = arith.constant 0 : i32
    %c0_i32_1 = arith.constant 0 : i32
    return %c0_i32, %c0_i32_0 : i32, i32
  }
  func.func @transform_3(%arg0: i32) -> (i32, i32) {
    %c0_i32 = arith.constant 0 : i32
    %c0_i32_0 = arith.constant 0 : i32
    %c0_i32_1 = arith.constant 0 : i32
    return %c0_i32, %c0_i32_0 : i32, i32
  }
  func.func @transform_4(%arg0: i32) -> (i32, i32) {
    %c0_i32 = arith.constant 0 : i32
    %c0_i32_0 = arith.constant 0 : i32
    %c0_i32_1 = arith.constant 0 : i32
    return %c0_i32, %c0_i32_0 : i32, i32
  }
  func.func @transform_5(%arg0: i32) -> (i32, i32) {
    %c0_i32 = arith.constant 0 : i32
    %c0_i32_0 = arith.constant 0 : i32
    return %arg0, %c0_i32 : i32, i32
  }
}

</mosaic_0001>

<llo_original>
// kernel: fc_forward.1
$region0: #{fc_forward.1}
  #allocation0 [shape = 'u32[]', space=smem, size = 0x4, offset = 0x4, fixed_abs, tag = 'smem constant byte address 0x4 - core index']
  #allocation1 [shape = 'u32[144,128]{1,0:T(1,128)}', space=vmem, size = 0x12000, scoped, tag = 'internal scratch']
  %s0 = inlined_call_operand.vmem [shape: bf16[8,1024], index: 0, kind: input, shape index: {}]
  %s1 = inlined_call_operand.vmem [shape: bf16[1024,512], index: 1, kind: input, shape index: {}]
  %s2 = inlined_call_operand.vmem [shape: f32[1,512], index: 2, kind: input, shape index: {}]
  %s3 = inlined_call_operand.vmem [shape: bf16[512,128], index: 3, kind: input, shape index: {}]
  %s4 = inlined_call_operand.vmem [shape: f32[1,128], index: 4, kind: input, shape index: {}]
  %s5 = inlined_call_operand.hbm [shape: f32[8,128], index: 5, kind: output, shape index: {}]
  %s6 = sld [smem:[#allocation0]]
  $region30: #{fc_forward.1} parent=0
    _
  %s8 = ssub.s32 1, %s6
  %s9 = scalar_select 0, %s8, %s6
  $region1: #{fc_forward.1} parent=0
    #allocation2 [shape = 'u8[4096]{0}', space=vmem, size = 0x1000, scoped, tag = 'output window, operand 0, single buffered']
    #allocation3 [shape = 's32[1]{0}', space=sflag, size = 0x4, scoped, tag = 'scoped memory for fc_forward.1']
    %10 = vsyncpa [#allocation3], 0
    // Predicated region
    $region2: #{fc_forward.1} parent=1 // pred_check
      _
    $region3: #{fc_forward.1} parent=1 // pred_check_branch
      %12 = sbr.rel (0) target = $region5
    $region4: #{fc_forward.1} parent=1 // pred_region
      _
    $region5: #{fc_forward.1} parent=1 // pred_fallthru
      _
    // Predicated region
    $region6: #{fc_forward.1} parent=1 // pred_check
      _
    $region7: #{fc_forward.1} parent=1 // pred_check_branch
      %14 = sbr.rel (0) target = $region9
    $region8: #{fc_forward.1} parent=1 // pred_region
      _
    $region9: #{fc_forward.1} parent=1 // pred_fallthru
      _
    // Predicated region
    $region10: #{fc_forward.1} parent=1 // pred_check
      _
    $region11: #{fc_forward.1} parent=1 // pred_check_branch
      %16 = sbr.rel (0) target = $region13
    $region12: #{fc_forward.1} parent=1 // pred_region
      _
    $region13: #{fc_forward.1} parent=1 // pred_fallthru
      _
    // Predicated region
    $region14: #{fc_forward.1} parent=1 // pred_check
      _
    $region15: #{fc_forward.1} parent=1 // pred_check_branch
      %18 = sbr.rel (0) target = $region17
    $region16: #{fc_forward.1} parent=1 // pred_region
      _
    $region17: #{fc_forward.1} parent=1 // pred_fallthru
      _
    // Predicated region
    $region18: #{fc_forward.1} parent=1 // pred_check
      _
    $region19: #{fc_forward.1} parent=1 // pred_check_branch
      %20 = sbr.rel (0) target = $region21
    $region20: #{fc_forward.1} parent=1 // pred_region
      _
    $region21: #{fc_forward.1} parent=1 // pred_fallthru
      _
    %v22 = vld [vmem:[%s0] sm:$0xff]
    %v23 = vld [vmem:[%s0 + $0x8] sm:$0xff]
    %v24 = vld [vmem:[%s0 + $0x10] sm:$0xff]
    %v25 = vld [vmem:[%s0 + $0x18] sm:$0xff]
    %v26 = vld [vmem:[%s1] sm:$0xff]
    %v27 = vld [vmem:[%s1 + $0x8] sm:$0xff]
    %v28 = vld [vmem:[%s1 + $0x10] sm:$0xff]
    %v29 = vld [vmem:[%s1 + $0x18] sm:$0xff]
    %v30 = vld [vmem:[%s1 + $0x20] sm:$0xff]
    %v31 = vld [vmem:[%s1 + $0x28] sm:$0xff]
    %v32 = vld [vmem:[%s1 + $0x30] sm:$0xff]
    %v33 = vld [vmem:[%s1 + $0x38] sm:$0xff]
    %v34 = vld [vmem:[%s1 + $0x40] sm:$0xff]
    %v35 = vld [vmem:[%s1 + $0x48] sm:$0xff]
    %v36 = vld [vmem:[%s1 + $0x50] sm:$0xff]
    %v37 = vld [vmem:[%s1 + $0x58] sm:$0xff]
    %v38 = vld [vmem:[%s1 + $0x60] sm:$0xff]
    %v39 = vld [vmem:[%s1 + $0x68] sm:$0xff]
    %v40 = vld [vmem:[%s1 + $0x70] sm:$0xff]
    %v41 = vld [vmem:[%s1 + $0x78] sm:$0xff]
    %v42 = vld [vmem:[%s1 + $0x80] sm:$0xff]
    %v43 = vld [vmem:[%s1 + $0x88] sm:$0xff]
    %v44 = vld [vmem:[%s1 + $0x90] sm:$0xff]
    %v45 = vld [vmem:[%s1 + $0x98] sm:$0xff]
    %v46 = vld [vmem:[%s1 + $0xa0] sm:$0xff]
    %v47 = vld [vmem:[%s1 + $0xa8] sm:$0xff]
    %v48 = vld [vmem:[%s1 + $0xb0] sm:$0xff]
    %v49 = vld [vmem:[%s1 + $0xb8] sm:$0xff]
    %v50 = vld [vmem:[%s1 + $0xc0] sm:$0xff]
    %v51 = vld [vmem:[%s1 + $0xc8] sm:$0xff]
    %v52 = vld [vmem:[%s1 + $0xd0] sm:$0xff]
    %v53 = vld [vmem:[%s1 + $0xd8] sm:$0xff]
    %v54 = vld [vmem:[%s1 + $0xe0] sm:$0xff]
    %v55 = vld [vmem:[%s1 + $0xe8] sm:$0xff]
    %v56 = vld [vmem:[%s1 + $0xf0] sm:$0xff]
    %v57 = vld [vmem:[%s1 + $0xf8] sm:$0xff]
    %v58 = vld [vmem:[%s1 + $0x100] sm:$0xff]
    %v59 = vld [vmem:[%s1 + $0x108] sm:$0xff]
    %v60 = vld [vmem:[%s1 + $0x110] sm:$0xff]
    %v61 = vld [vmem:[%s1 + $0x118] sm:$0xff]
    %v62 = vld [vmem:[%s1 + $0x120] sm:$0xff]
    %v63 = vld [vmem:[%s1 + $0x128] sm:$0xff]
    %v64 = vld [vmem:[%s1 + $0x130] sm:$0xff]
    %v65 = vld [vmem:[%s1 + $0x138] sm:$0xff]
    %v66 = vld [vmem:[%s1 + $0x140] sm:$0xff]
    %v67 = vld [vmem:[%s1 + $0x148] sm:$0xff]
    %v68 = vld [vmem:[%s1 + $0x150] sm:$0xff]
    %v69 = vld [vmem:[%s1 + $0x158] sm:$0xff]
    %v70 = vld [vmem:[%s1 + $0x160] sm:$0xff]
    %v71 = vld [vmem:[%s1 + $0x168] sm:$0xff]
    %v72 = vld [vmem:[%s1 + $0x170] sm:$0xff]
    %v73 = vld [vmem:[%s1 + $0x178] sm:$0xff]
    %v74 = vld [vmem:[%s1 + $0x180] sm:$0xff]
    %v75 = vld [vmem:[%s1 + $0x188] sm:$0xff]
    %v76 = vld [vmem:[%s1 + $0x190] sm:$0xff]
    %v77 = vld [vmem:[%s1 + $0x198] sm:$0xff]
    %v78 = vld [vmem:[%s1 + $0x1a0] sm:$0xff]
    %v79 = vld [vmem:[%s1 + $0x1a8] sm:$0xff]
    %v80 = vld [vmem:[%s1 + $0x1b0] sm:$0xff]
    %v81 = vld [vmem:[%s1 + $0x1b8] sm:$0xff]
    %v82 = vld [vmem:[%s1 + $0x1c0] sm:$0xff]
    %v83 = vld [vmem:[%s1 + $0x1c8] sm:$0xff]
    %v84 = vld [vmem:[%s1 + $0x1d0] sm:$0xff]
    %v85 = vld [vmem:[%s1 + $0x1d8] sm:$0xff]
    %v86 = vld [vmem:[%s1 + $0x1e0] sm:$0xff]
    %v87 = vld [vmem:[%s1 + $0x1e8] sm:$0xff]
    %v88 = vld [vmem:[%s1 + $0x1f0] sm:$0xff]
    %v89 = vld [vmem:[%s1 + $0x1f8] sm:$0xff]
    %v90 = vld [vmem:[%s1 + $0x200] sm:$0xff]
    %v91 = vld [vmem:[%s1 + $0x208] sm:$0xff]
    %v92 = vld [vmem:[%s1 + $0x210] sm:$0xff]
    %v93 = vld [vmem:[%s1 + $0x218] sm:$0xff]
    %v94 = vld [vmem:[%s1 + $0x220] sm:$0xff]
    %v95 = vld [vmem:[%s1 + $0x228] sm:$0xff]
    %v96 = vld [vmem:[%s1 + $0x230] sm:$0xff]
    %v97 = vld [vmem:[%s1 + $0x238] sm:$0xff]
    %v98 = vld [vmem:[%s1 + $0x240] sm:$0xff]
    %v99 = vld [vmem:[%s1 + $0x248] sm:$0xff]
    %v100 = vld [vmem:[%s1 + $0x250] sm:$0xff]
    %v101 = vld [vmem:[%s1 + $0x258] sm:$0xff]
    %v102 = vld [vmem:[%s1 + $0x260] sm:$0xff]
    %v103 = vld [vmem:[%s1 + $0x268] sm:$0xff]
    %v104 = vld [vmem:[%s1 + $0x270] sm:$0xff]
    %v105 = vld [vmem:[%s1 + $0x278] sm:$0xff]
    %v106 = vld [vmem:[%s1 + $0x280] sm:$0xff]
    %v107 = vld [vmem:[%s1 + $0x288] sm:$0xff]
    %v108 = vld [vmem:[%s1 + $0x290] sm:$0xff]
    %v109 = vld [vmem:[%s1 + $0x298] sm:$0xff]
    %v110 = vld [vmem:[%s1 + $0x2a0] sm:$0xff]
    %v111 = vld [vmem:[%s1 + $0x2a8] sm:$0xff]
    %v112 = vld [vmem:[%s1 + $0x2b0] sm:$0xff]
    %v113 = vld [vmem:[%s1 + $0x2b8] sm:$0xff]
    %v114 = vld [vmem:[%s1 + $0x2c0] sm:$0xff]
    %v115 = vld [vmem:[%s1 + $0x2c8] sm:$0xff]
    %v116 = vld [vmem:[%s1 + $0x2d0] sm:$0xff]
    %v117 = vld [vmem:[%s1 + $0x2d8] sm:$0xff]
    %v118 = vld [vmem:[%s1 + $0x2e0] sm:$0xff]
    %v119 = vld [vmem:[%s1 + $0x2e8] sm:$0xff]
    %v120 = vld [vmem:[%s1 + $0x2f0] sm:$0xff]
    %v121 = vld [vmem:[%s1 + $0x2f8] sm:$0xff]
    %v122 = vld [vmem:[%s1 + $0x300] sm:$0xff]
    %v123 = vld [vmem:[%s1 + $0x308] sm:$0xff]
    %v124 = vld [vmem:[%s1 + $0x310] sm:$0xff]
    %v125 = vld [vmem:[%s1 + $0x318] sm:$0xff]
    %v126 = vld [vmem:[%s1 + $0x320] sm:$0xff]
    %v127 = vld [vmem:[%s1 + $0x328] sm:$0xff]
    %v128 = vld [vmem:[%s1 + $0x330] sm:$0xff]
    %v129 = vld [vmem:[%s1 + $0x338] sm:$0xff]
    %v130 = vld [vmem:[%s1 + $0x340] sm:$0xff]
    %v131 = vld [vmem:[%s1 + $0x348] sm:$0xff]
    %v132 = vld [vmem:[%s1 + $0x350] sm:$0xff]
    %v133 = vld [vmem:[%s1 + $0x358] sm:$0xff]
    %v134 = vld [vmem:[%s1 + $0x360] sm:$0xff]
    %v135 = vld [vmem:[%s1 + $0x368] sm:$0xff]
    %v136 = vld [vmem:[%s1 + $0x370] sm:$0xff]
    %v137 = vld [vmem:[%s1 + $0x378] sm:$0xff]
    %v138 = vld [vmem:[%s1 + $0x380] sm:$0xff]
    %v139 = vld [vmem:[%s1 + $0x388] sm:$0xff]
    %v140 = vld [vmem:[%s1 + $0x390] sm:$0xff]
    %v141 = vld [vmem:[%s1 + $0x398] sm:$0xff]
    %v142 = vld [vmem:[%s1 + $0x3a0] sm:$0xff]
    %v143 = vld [vmem:[%s1 + $0x3a8] sm:$0xff]
    %v144 = vld [vmem:[%s1 + $0x3b0] sm:$0xff]
    %v145 = vld [vmem:[%s1 + $0x3b8] sm:$0xff]
    %v146 = vld [vmem:[%s1 + $0x3c0] sm:$0xff]
    %v147 = vld [vmem:[%s1 + $0x3c8] sm:$0xff]
    %v148 = vld [vmem:[%s1 + $0x3d0] sm:$0xff]
    %v149 = vld [vmem:[%s1 + $0x3d8] sm:$0xff]
    %v150 = vld [vmem:[%s1 + $0x3e0] sm:$0xff]
    %v151 = vld [vmem:[%s1 + $0x3e8] sm:$0xff]
    %v152 = vld [vmem:[%s1 + $0x3f0] sm:$0xff]
    %v153 = vld [vmem:[%s1 + $0x3f8] sm:$0xff]
    %v154 = vld [vmem:[%s1 + $0x400] sm:$0xff]
    %v155 = vld [vmem:[%s1 + $0x408] sm:$0xff]
    %v156 = vld [vmem:[%s1 + $0x410] sm:$0xff]
    %v157 = vld [vmem:[%s1 + $0x418] sm:$0xff]
    %v158 = vld [vmem:[%s1 + $0x420] sm:$0xff]
    %v159 = vld [vmem:[%s1 + $0x428] sm:$0xff]
    %v160 = vld [vmem:[%s1 + $0x430] sm:$0xff]
    %v161 = vld [vmem:[%s1 + $0x438] sm:$0xff]
    %v162 = vld [vmem:[%s1 + $0x440] sm:$0xff]
    %v163 = vld [vmem:[%s1 + $0x448] sm:$0xff]
    %v164 = vld [vmem:[%s1 + $0x450] sm:$0xff]
    %v165 = vld [vmem:[%s1 + $0x458] sm:$0xff]
    %v166 = vld [vmem:[%s1 + $0x460] sm:$0xff]
    %v167 = vld [vmem:[%s1 + $0x468] sm:$0xff]
    %v168 = vld [vmem:[%s1 + $0x470] sm:$0xff]
    %v169 = vld [vmem:[%s1 + $0x478] sm:$0xff]
    %v170 = vld [vmem:[%s1 + $0x480] sm:$0xff]
    %v171 = vld [vmem:[%s1 + $0x488] sm:$0xff]
    %v172 = vld [vmem:[%s1 + $0x490] sm:$0xff]
    %v173 = vld [vmem:[%s1 + $0x498] sm:$0xff]
    %v174 = vld [vmem:[%s1 + $0x4a0] sm:$0xff]
    %v175 = vld [vmem:[%s1 + $0x4a8] sm:$0xff]
    %v176 = vld [vmem:[%s1 + $0x4b0] sm:$0xff]
    %v177 = vld [vmem:[%s1 + $0x4b8] sm:$0xff]
    %v178 = vld [vmem:[%s1 + $0x4c0] sm:$0xff]
    %v179 = vld [vmem:[%s1 + $0x4c8] sm:$0xff]
    %v180 = vld [vmem:[%s1 + $0x4d0] sm:$0xff]
    %v181 = vld [vmem:[%s1 + $0x4d8] sm:$0xff]
    %v182 = vld [vmem:[%s1 + $0x4e0] sm:$0xff]
    %v183 = vld [vmem:[%s1 + $0x4e8] sm:$0xff]
    %v184 = vld [vmem:[%s1 + $0x4f0] sm:$0xff]
    %v185 = vld [vmem:[%s1 + $0x4f8] sm:$0xff]
    %v186 = vld [vmem:[%s1 + $0x500] sm:$0xff]
    %v187 = vld [vmem:[%s1 + $0x508] sm:$0xff]
    %v188 = vld [vmem:[%s1 + $0x510] sm:$0xff]
    %v189 = vld [vmem:[%s1 + $0x518] sm:$0xff]
    %v190 = vld [vmem:[%s1 + $0x520] sm:$0xff]
    %v191 = vld [vmem:[%s1 + $0x528] sm:$0xff]
    %v192 = vld [vmem:[%s1 + $0x530] sm:$0xff]
    %v193 = vld [vmem:[%s1 + $0x538] sm:$0xff]
    %v194 = vld [vmem:[%s1 + $0x540] sm:$0xff]
    %v195 = vld [vmem:[%s1 + $0x548] sm:$0xff]
    %v196 = vld [vmem:[%s1 + $0x550] sm:$0xff]
    %v197 = vld [vmem:[%s1 + $0x558] sm:$0xff]
    %v198 = vld [vmem:[%s1 + $0x560] sm:$0xff]
    %v199 = vld [vmem:[%s1 + $0x568] sm:$0xff]
    %v200 = vld [vmem:[%s1 + $0x570] sm:$0xff]
    %v201 = vld [vmem:[%s1 + $0x578] sm:$0xff]
    %v202 = vld [vmem:[%s1 + $0x580] sm:$0xff]
    %v203 = vld [vmem:[%s1 + $0x588] sm:$0xff]
    %v204 = vld [vmem:[%s1 + $0x590] sm:$0xff]
    %v205 = vld [vmem:[%s1 + $0x598] sm:$0xff]
    %v206 = vld [vmem:[%s1 + $0x5a0] sm:$0xff]
    %v207 = vld [vmem:[%s1 + $0x5a8] sm:$0xff]
    %v208 = vld [vmem:[%s1 + $0x5b0] sm:$0xff]
    %v209 = vld [vmem:[%s1 + $0x5b8] sm:$0xff]
    %v210 = vld [vmem:[%s1 + $0x5c0] sm:$0xff]
    %v211 = vld [vmem:[%s1 + $0x5c8] sm:$0xff]
    %v212 = vld [vmem:[%s1 + $0x5d0] sm:$0xff]
    %v213 = vld [vmem:[%s1 + $0x5d8] sm:$0xff]
    %v214 = vld [vmem:[%s1 + $0x5e0] sm:$0xff]
    %v215 = vld [vmem:[%s1 + $0x5e8] sm:$0xff]
    %v216 = vld [vmem:[%s1 + $0x5f0] sm:$0xff]
    %v217 = vld [vmem:[%s1 + $0x5f8] sm:$0xff]
    %v218 = vld [vmem:[%s1 + $0x600] sm:$0xff]
    %v219 = vld [vmem:[%s1 + $0x608] sm:$0xff]
    %v220 = vld [vmem:[%s1 + $0x610] sm:$0xff]
    %v221 = vld [vmem:[%s1 + $0x618] sm:$0xff]
    %v222 = vld [vmem:[%s1 + $0x620] sm:$0xff]
    %v223 = vld [vmem:[%s1 + $0x628] sm:$0xff]
    %v224 = vld [vmem:[%s1 + $0x630] sm:$0xff]
    %v225 = vld [vmem:[%s1 + $0x638] sm:$0xff]
    %v226 = vld [vmem:[%s1 + $0x640] sm:$0xff]
    %v227 = vld [vmem:[%s1 + $0x648] sm:$0xff]
    %v228 = vld [vmem:[%s1 + $0x650] sm:$0xff]
    %v229 = vld [vmem:[%s1 + $0x658] sm:$0xff]
    %v230 = vld [vmem:[%s1 + $0x660] sm:$0xff]
    %v231 = vld [vmem:[%s1 + $0x668] sm:$0xff]
    %v232 = vld [vmem:[%s1 + $0x670] sm:$0xff]
    %v233 = vld [vmem:[%s1 + $0x678] sm:$0xff]
    %v234 = vld [vmem:[%s1 + $0x680] sm:$0xff]
    %v235 = vld [vmem:[%s1 + $0x688] sm:$0xff]
    %v236 = vld [vmem:[%s1 + $0x690] sm:$0xff]
    %v237 = vld [vmem:[%s1 + $0x698] sm:$0xff]
    %v238 = vld [vmem:[%s1 + $0x6a0] sm:$0xff]
    %v239 = vld [vmem:[%s1 + $0x6a8] sm:$0xff]
    %v240 = vld [vmem:[%s1 + $0x6b0] sm:$0xff]
    %v241 = vld [vmem:[%s1 + $0x6b8] sm:$0xff]
    %v242 = vld [vmem:[%s1 + $0x6c0] sm:$0xff]
    %v243 = vld [vmem:[%s1 + $0x6c8] sm:$0xff]
    %v244 = vld [vmem:[%s1 + $0x6d0] sm:$0xff]
    %v245 = vld [vmem:[%s1 + $0x6d8] sm:$0xff]
    %v246 = vld [vmem:[%s1 + $0x6e0] sm:$0xff]
    %v247 = vld [vmem:[%s1 + $0x6e8] sm:$0xff]
    %v248 = vld [vmem:[%s1 + $0x6f0] sm:$0xff]
    %v249 = vld [vmem:[%s1 + $0x6f8] sm:$0xff]
    %v250 = vld [vmem:[%s1 + $0x700] sm:$0xff]
    %v251 = vld [vmem:[%s1 + $0x708] sm:$0xff]
    %v252 = vld [vmem:[%s1 + $0x710] sm:$0xff]
    %v253 = vld [vmem:[%s1 + $0x718] sm:$0xff]
    %v254 = vld [vmem:[%s1 + $0x720] sm:$0xff]
    %v255 = vld [vmem:[%s1 + $0x728] sm:$0xff]
    %v256 = vld [vmem:[%s1 + $0x730] sm:$0xff]
    %v257 = vld [vmem:[%s1 + $0x738] sm:$0xff]
    %v258 = vld [vmem:[%s1 + $0x740] sm:$0xff]
    %v259 = vld [vmem:[%s1 + $0x748] sm:$0xff]
    %v260 = vld [vmem:[%s1 + $0x750] sm:$0xff]
    %v261 = vld [vmem:[%s1 + $0x758] sm:$0xff]
    %v262 = vld [vmem:[%s1 + $0x760] sm:$0xff]
    %v263 = vld [vmem:[%s1 + $0x768] sm:$0xff]
    %v264 = vld [vmem:[%s1 + $0x770] sm:$0xff]
    %v265 = vld [vmem:[%s1 + $0x778] sm:$0xff]
    %v266 = vld [vmem:[%s1 + $0x780] sm:$0xff]
    %v267 = vld [vmem:[%s1 + $0x788] sm:$0xff]
    %v268 = vld [vmem:[%s1 + $0x790] sm:$0xff]
    %v269 = vld [vmem:[%s1 + $0x798] sm:$0xff]
    %v270 = vld [vmem:[%s1 + $0x7a0] sm:$0xff]
    %v271 = vld [vmem:[%s1 + $0x7a8] sm:$0xff]
    %v272 = vld [vmem:[%s1 + $0x7b0] sm:$0xff]
    %v273 = vld [vmem:[%s1 + $0x7b8] sm:$0xff]
    %v274 = vld [vmem:[%s1 + $0x7c0] sm:$0xff]
    %v275 = vld [vmem:[%s1 + $0x7c8] sm:$0xff]
    %v276 = vld [vmem:[%s1 + $0x7d0] sm:$0xff]
    %v277 = vld [vmem:[%s1 + $0x7d8] sm:$0xff]
    %v278 = vld [vmem:[%s1 + $0x7e0] sm:$0xff]
    %v279 = vld [vmem:[%s1 + $0x7e8] sm:$0xff]
    %v280 = vld [vmem:[%s1 + $0x7f0] sm:$0xff]
    %v281 = vld [vmem:[%s1 + $0x7f8] sm:$0xff]
    %v282 = vld [vmem:[%s2] sm:$0xf]
    %v284 = vlaneseq
    %v285 = vshrl.u32 %v284, 7
    %v286 = vsub.s32 0, %v285
    %v287 = vrot.slane %v282, %v286
    %v288 = vlaneseq
    %v289 = vshrl.u32 %v288, 7
    %v290 = vsub.s32 1, %v289
    %v291 = vrot.slane %v282, %v290
    %v292 = vlaneseq
    %v293 = vshrl.u32 %v292, 7
    %v294 = vsub.s32 2, %v293
    %v295 = vrot.slane %v282, %v294
    %v296 = vlaneseq
    %v297 = vshrl.u32 %v296, 7
    %v298 = vsub.s32 3, %v297
    %v299 = vrot.slane %v282, %v298
    %v308 = vunpack.c.l.b16 %v22
    %v309 = vunpack.c.h.b16 %v22
    %v310 = vunpack.c.l.b16 %v23
    %v311 = vunpack.c.h.b16 %v23
    %v312 = vunpack.c.l.b16 %v24
    %v313 = vunpack.c.h.b16 %v24
    %v314 = vunpack.c.l.b16 %v25
    %v315 = vunpack.c.h.b16 %v25
    %v316 = vpack.c.b16 %v308, %v308
    %v317 = vpack.c.b16 %v309, %v309
    %v318 = vpack.c.b16 %v310, %v310
    %v319 = vpack.c.b16 %v311, %v311
    %v320 = vpack.c.b16 %v312, %v312
    %v321 = vpack.c.b16 %v313, %v313
    %v322 = vpack.c.b16 %v314, %v314
    %v323 = vpack.c.b16 %v315, %v315
    %v588 = vunpack.c.l.b16 %v26
    %v589 = vunpack.c.h.b16 %v26
    %v590 = vunpack.c.l.b16 %v27
    %v591 = vunpack.c.h.b16 %v27
    %v592 = vunpack.c.l.b16 %v28
    %v593 = vunpack.c.h.b16 %v28
    %v594 = vunpack.c.l.b16 %v29
    %v595 = vunpack.c.h.b16 %v29
    %v596 = vunpack.c.l.b16 %v30
    %v597 = vunpack.c.h.b16 %v30
    %v598 = vunpack.c.l.b16 %v31
    %v599 = vunpack.c.h.b16 %v31
    %v600 = vunpack.c.l.b16 %v32
    %v601 = vunpack.c.h.b16 %v32
    %v602 = vunpack.c.l.b16 %v33
    %v603 = vunpack.c.h.b16 %v33
    %v604 = vunpack.c.l.b16 %v34
    %v605 = vunpack.c.h.b16 %v34
    %v606 = vunpack.c.l.b16 %v35
    %v607 = vunpack.c.h.b16 %v35
    %v608 = vunpack.c.l.b16 %v36
    %v609 = vunpack.c.h.b16 %v36
    %v610 = vunpack.c.l.b16 %v37
    %v611 = vunpack.c.h.b16 %v37
    %v612 = vunpack.c.l.b16 %v38
    %v613 = vunpack.c.h.b16 %v38
    %v614 = vunpack.c.l.b16 %v39
    %v615 = vunpack.c.h.b16 %v39
    %v616 = vunpack.c.l.b16 %v40
    %v617 = vunpack.c.h.b16 %v40
    %v618 = vunpack.c.l.b16 %v41
    %v619 = vunpack.c.h.b16 %v41
    %v620 = vunpack.c.l.b16 %v42
    %v621 = vunpack.c.h.b16 %v42
    %v622 = vunpack.c.l.b16 %v43
    %v623 = vunpack.c.h.b16 %v43
    %v624 = vunpack.c.l.b16 %v44
    %v625 = vunpack.c.h.b16 %v44
    %v626 = vunpack.c.l.b16 %v45
    %v627 = vunpack.c.h.b16 %v45
    %v628 = vunpack.c.l.b16 %v46
    %v629 = vunpack.c.h.b16 %v46
    %v630 = vunpack.c.l.b16 %v47
    %v631 = vunpack.c.h.b16 %v47
    %v632 = vunpack.c.l.b16 %v48
    %v633 = vunpack.c.h.b16 %v48
    %v634 = vunpack.c.l.b16 %v49
    %v635 = vunpack.c.h.b16 %v49
    %v636 = vunpack.c.l.b16 %v50
    %v637 = vunpack.c.h.b16 %v50
    %v638 = vunpack.c.l.b16 %v51
    %v639 = vunpack.c.h.b16 %v51
    %v640 = vunpack.c.l.b16 %v52
    %v641 = vunpack.c.h.b16 %v52
    %v642 = vunpack.c.l.b16 %v53
    %v643 = vunpack.c.h.b16 %v53
    %v644 = vunpack.c.l.b16 %v54
    %v645 = vunpack.c.h.b16 %v54
    %v646 = vunpack.c.l.b16 %v55
    %v647 = vunpack.c.h.b16 %v55
    %v648 = vunpack.c.l.b16 %v56
    %v649 = vunpack.c.h.b16 %v56
    %v650 = vunpack.c.l.b16 %v57
    %v651 = vunpack.c.h.b16 %v57
    %v652 = vunpack.c.l.b16 %v58
    %v653 = vunpack.c.h.b16 %v58
    %v654 = vunpack.c.l.b16 %v59
    %v655 = vunpack.c.h.b16 %v59
    %v656 = vunpack.c.l.b16 %v60
    %v657 = vunpack.c.h.b16 %v60
    %v658 = vunpack.c.l.b16 %v61
    %v659 = vunpack.c.h.b16 %v61
    %v660 = vunpack.c.l.b16 %v62
    %v661 = vunpack.c.h.b16 %v62
    %v662 = vunpack.c.l.b16 %v63
    %v663 = vunpack.c.h.b16 %v63
    %v664 = vunpack.c.l.b16 %v64
    %v665 = vunpack.c.h.b16 %v64
    %v666 = vunpack.c.l.b16 %v65
    %v667 = vunpack.c.h.b16 %v65
    %v668 = vunpack.c.l.b16 %v66
    %v669 = vunpack.c.h.b16 %v66
    %v670 = vunpack.c.l.b16 %v67
    %v671 = vunpack.c.h.b16 %v67
    %v672 = vunpack.c.l.b16 %v68
    %v673 = vunpack.c.h.b16 %v68
    %v674 = vunpack.c.l.b16 %v69
    %v675 = vunpack.c.h.b16 %v69
    %v676 = vunpack.c.l.b16 %v70
    %v677 = vunpack.c.h.b16 %v70
    %v678 = vunpack.c.l.b16 %v71
    %v679 = vunpack.c.h.b16 %v71
    %v680 = vunpack.c.l.b16 %v72
    %v681 = vunpack.c.h.b16 %v72
    %v682 = vunpack.c.l.b16 %v73
    %v683 = vunpack.c.h.b16 %v73
    %v684 = vunpack.c.l.b16 %v74
    %v685 = vunpack.c.h.b16 %v74
    %v686 = vunpack.c.l.b16 %v75
    %v687 = vunpack.c.h.b16 %v75
    %v688 = vunpack.c.l.b16 %v76
    %v689 = vunpack.c.h.b16 %v76
    %v690 = vunpack.c.l.b16 %v77
    %v691 = vunpack.c.h.b16 %v77
    %v692 = vunpack.c.l.b16 %v78
    %v693 = vunpack.c.h.b16 %v78
    %v694 = vunpack.c.l.b16 %v79
    %v695 = vunpack.c.h.b16 %v79
    %v696 = vunpack.c.l.b16 %v80
    %v697 = vunpack.c.h.b16 %v80
    %v698 = vunpack.c.l.b16 %v81
    %v699 = vunpack.c.h.b16 %v81
    %v700 = vunpack.c.l.b16 %v82
    %v701 = vunpack.c.h.b16 %v82
    %v702 = vunpack.c.l.b16 %v83
    %v703 = vunpack.c.h.b16 %v83
    %v704 = vunpack.c.l.b16 %v84
    %v705 = vunpack.c.h.b16 %v84
    %v706 = vunpack.c.l.b16 %v85
    %v707 = vunpack.c.h.b16 %v85
    %v708 = vunpack.c.l.b16 %v86
    %v709 = vunpack.c.h.b16 %v86
    %v710 = vunpack.c.l.b16 %v87
    %v711 = vunpack.c.h.b16 %v87
    %v712 = vunpack.c.l.b16 %v88
    %v713 = vunpack.c.h.b16 %v88
    %v714 = vunpack.c.l.b16 %v89
    %v715 = vunpack.c.h.b16 %v89
    %v716 = vunpack.c.l.b16 %v90
    %v717 = vunpack.c.h.b16 %v90
    %v718 = vunpack.c.l.b16 %v91
    %v719 = vunpack.c.h.b16 %v91
    %v720 = vunpack.c.l.b16 %v92
    %v721 = vunpack.c.h.b16 %v92
    %v722 = vunpack.c.l.b16 %v93
    %v723 = vunpack.c.h.b16 %v93
    %v724 = vunpack.c.l.b16 %v94
    %v725 = vunpack.c.h.b16 %v94
    %v726 = vunpack.c.l.b16 %v95
    %v727 = vunpack.c.h.b16 %v95
    %v728 = vunpack.c.l.b16 %v96
    %v729 = vunpack.c.h.b16 %v96
    %v730 = vunpack.c.l.b16 %v97
    %v731 = vunpack.c.h.b16 %v97
    %v732 = vunpack.c.l.b16 %v98
    %v733 = vunpack.c.h.b16 %v98
    %v734 = vunpack.c.l.b16 %v99
    %v735 = vunpack.c.h.b16 %v99
    %v736 = vunpack.c.l.b16 %v100
    %v737 = vunpack.c.h.b16 %v100
    %v738 = vunpack.c.l.b16 %v101
    %v739 = vunpack.c.h.b16 %v101
    %v740 = vunpack.c.l.b16 %v102
    %v741 = vunpack.c.h.b16 %v102
    %v742 = vunpack.c.l.b16 %v103
    %v743 = vunpack.c.h.b16 %v103
    %v744 = vunpack.c.l.b16 %v104
    %v745 = vunpack.c.h.b16 %v104
    %v746 = vunpack.c.l.b16 %v105
    %v747 = vunpack.c.h.b16 %v105
    %v748 = vunpack.c.l.b16 %v106
    %v749 = vunpack.c.h.b16 %v106
    %v750 = vunpack.c.l.b16 %v107
    %v751 = vunpack.c.h.b16 %v107
    %v752 = vunpack.c.l.b16 %v108
    %v753 = vunpack.c.h.b16 %v108
    %v754 = vunpack.c.l.b16 %v109
    %v755 = vunpack.c.h.b16 %v109
    %v756 = vunpack.c.l.b16 %v110
    %v757 = vunpack.c.h.b16 %v110
    %v758 = vunpack.c.l.b16 %v111
    %v759 = vunpack.c.h.b16 %v111
    %v760 = vunpack.c.l.b16 %v112
    %v761 = vunpack.c.h.b16 %v112
    %v762 = vunpack.c.l.b16 %v113
    %v763 = vunpack.c.h.b16 %v113
    %v764 = vunpack.c.l.b16 %v114
    %v765 = vunpack.c.h.b16 %v114
    %v766 = vunpack.c.l.b16 %v115
    %v767 = vunpack.c.h.b16 %v115
    %v768 = vunpack.c.l.b16 %v116
    %v769 = vunpack.c.h.b16 %v116
    %v770 = vunpack.c.l.b16 %v117
    %v771 = vunpack.c.h.b16 %v117
    %v772 = vunpack.c.l.b16 %v118
    %v773 = vunpack.c.h.b16 %v118
    %v774 = vunpack.c.l.b16 %v119
    %v775 = vunpack.c.h.b16 %v119
    %v776 = vunpack.c.l.b16 %v120
    %v777 = vunpack.c.h.b16 %v120
    %v778 = vunpack.c.l.b16 %v121
    %v779 = vunpack.c.h.b16 %v121
    %v780 = vunpack.c.l.b16 %v122
    %v781 = vunpack.c.h.b16 %v122
    %v782 = vunpack.c.l.b16 %v123
    %v783 = vunpack.c.h.b16 %v123
    %v784 = vunpack.c.l.b16 %v124
    %v785 = vunpack.c.h.b16 %v124
    %v786 = vunpack.c.l.b16 %v125
    %v787 = vunpack.c.h.b16 %v125
    %v788 = vunpack.c.l.b16 %v126
    %v789 = vunpack.c.h.b16 %v126
    %v790 = vunpack.c.l.b16 %v127
    %v791 = vunpack.c.h.b16 %v127
    %v792 = vunpack.c.l.b16 %v128
    %v793 = vunpack.c.h.b16 %v128
    %v794 = vunpack.c.l.b16 %v129
    %v795 = vunpack.c.h.b16 %v129
    %v796 = vunpack.c.l.b16 %v130
    %v797 = vunpack.c.h.b16 %v130
    %v798 = vunpack.c.l.b16 %v131
    %v799 = vunpack.c.h.b16 %v131
    %v800 = vunpack.c.l.b16 %v132
    %v801 = vunpack.c.h.b16 %v132
    %v802 = vunpack.c.l.b16 %v133
    %v803 = vunpack.c.h.b16 %v133
    %v804 = vunpack.c.l.b16 %v134
    %v805 = vunpack.c.h.b16 %v134
    %v806 = vunpack.c.l.b16 %v135
    %v807 = vunpack.c.h.b16 %v135
    %v808 = vunpack.c.l.b16 %v136
    %v809 = vunpack.c.h.b16 %v136
    %v810 = vunpack.c.l.b16 %v137
    %v811 = vunpack.c.h.b16 %v137
    %v812 = vunpack.c.l.b16 %v138
    %v813 = vunpack.c.h.b16 %v138
    %v814 = vunpack.c.l.b16 %v139
    %v815 = vunpack.c.h.b16 %v139
    %v816 = vunpack.c.l.b16 %v140
    %v817 = vunpack.c.h.b16 %v140
    %v818 = vunpack.c.l.b16 %v141
    %v819 = vunpack.c.h.b16 %v141
    %v820 = vunpack.c.l.b16 %v142
    %v821 = vunpack.c.h.b16 %v142
    %v822 = vunpack.c.l.b16 %v143
    %v823 = vunpack.c.h.b16 %v143
    %v824 = vunpack.c.l.b16 %v144
    %v825 = vunpack.c.h.b16 %v144
    %v826 = vunpack.c.l.b16 %v145
    %v827 = vunpack.c.h.b16 %v145
    %v828 = vunpack.c.l.b16 %v146
    %v829 = vunpack.c.h.b16 %v146
    %v830 = vunpack.c.l.b16 %v147
    %v831 = vunpack.c.h.b16 %v147
    %v832 = vunpack.c.l.b16 %v148
    %v833 = vunpack.c.h.b16 %v148
    %v834 = vunpack.c.l.b16 %v149
    %v835 = vunpack.c.h.b16 %v149
    %v836 = vunpack.c.l.b16 %v150
    %v837 = vunpack.c.h.b16 %v150
    %v838 = vunpack.c.l.b16 %v151
    %v839 = vunpack.c.h.b16 %v151
    %v840 = vunpack.c.l.b16 %v152
    %v841 = vunpack.c.h.b16 %v152
    %v842 = vunpack.c.l.b16 %v153
    %v843 = vunpack.c.h.b16 %v153
    %v844 = vunpack.c.l.b16 %v154
    %v845 = vunpack.c.h.b16 %v154
    %v846 = vunpack.c.l.b16 %v155
    %v847 = vunpack.c.h.b16 %v155
    %v848 = vunpack.c.l.b16 %v156
    %v849 = vunpack.c.h.b16 %v156
    %v850 = vunpack.c.l.b16 %v157
    %v851 = vunpack.c.h.b16 %v157
    %v852 = vunpack.c.l.b16 %v158
    %v853 = vunpack.c.h.b16 %v158
    %v854 = vunpack.c.l.b16 %v159
    %v855 = vunpack.c.h.b16 %v159
    %v856 = vunpack.c.l.b16 %v160
    %v857 = vunpack.c.h.b16 %v160
    %v858 = vunpack.c.l.b16 %v161
    %v859 = vunpack.c.h.b16 %v161
    %v860 = vunpack.c.l.b16 %v162
    %v861 = vunpack.c.h.b16 %v162
    %v862 = vunpack.c.l.b16 %v163
    %v863 = vunpack.c.h.b16 %v163
    %v864 = vunpack.c.l.b16 %v164
    %v865 = vunpack.c.h.b16 %v164
    %v866 = vunpack.c.l.b16 %v165
    %v867 = vunpack.c.h.b16 %v165
    %v868 = vunpack.c.l.b16 %v166
    %v869 = vunpack.c.h.b16 %v166
    %v870 = vunpack.c.l.b16 %v167
    %v871 = vunpack.c.h.b16 %v167
    %v872 = vunpack.c.l.b16 %v168
    %v873 = vunpack.c.h.b16 %v168
    %v874 = vunpack.c.l.b16 %v169
    %v875 = vunpack.c.h.b16 %v169
    %v876 = vunpack.c.l.b16 %v170
    %v877 = vunpack.c.h.b16 %v170
    %v878 = vunpack.c.l.b16 %v171
    %v879 = vunpack.c.h.b16 %v171
    %v880 = vunpack.c.l.b16 %v172
    %v881 = vunpack.c.h.b16 %v172
    %v882 = vunpack.c.l.b16 %v173
    %v883 = vunpack.c.h.b16 %v173
    %v884 = vunpack.c.l.b16 %v174
    %v885 = vunpack.c.h.b16 %v174
    %v886 = vunpack.c.l.b16 %v175
    %v887 = vunpack.c.h.b16 %v175
    %v888 = vunpack.c.l.b16 %v176
    %v889 = vunpack.c.h.b16 %v176
    %v890 = vunpack.c.l.b16 %v177
    %v891 = vunpack.c.h.b16 %v177
    %v892 = vunpack.c.l.b16 %v178
    %v893 = vunpack.c.h.b16 %v178
    %v894 = vunpack.c.l.b16 %v179
    %v895 = vunpack.c.h.b16 %v179
    %v896 = vunpack.c.l.b16 %v180
    %v897 = vunpack.c.h.b16 %v180
    %v898 = vunpack.c.l.b16 %v181
    %v899 = vunpack.c.h.b16 %v181
    %v900 = vunpack.c.l.b16 %v182
    %v901 = vunpack.c.h.b16 %v182
    %v902 = vunpack.c.l.b16 %v183
    %v903 = vunpack.c.h.b16 %v183
    %v904 = vunpack.c.l.b16 %v184
    %v905 = vunpack.c.h.b16 %v184
    %v906 = vunpack.c.l.b16 %v185
    %v907 = vunpack.c.h.b16 %v185
    %v908 = vunpack.c.l.b16 %v186
    %v909 = vunpack.c.h.b16 %v186
    %v910 = vunpack.c.l.b16 %v187
    %v911 = vunpack.c.h.b16 %v187
    %v912 = vunpack.c.l.b16 %v188
    %v913 = vunpack.c.h.b16 %v188
    %v914 = vunpack.c.l.b16 %v189
    %v915 = vunpack.c.h.b16 %v189
    %v916 = vunpack.c.l.b16 %v190
    %v917 = vunpack.c.h.b16 %v190
    %v918 = vunpack.c.l.b16 %v191
    %v919 = vunpack.c.h.b16 %v191
    %v920 = vunpack.c.l.b16 %v192
    %v921 = vunpack.c.h.b16 %v192
    %v922 = vunpack.c.l.b16 %v193
    %v923 = vunpack.c.h.b16 %v193
    %v924 = vunpack.c.l.b16 %v194
    %v925 = vunpack.c.h.b16 %v194
    %v926 = vunpack.c.l.b16 %v195
    %v927 = vunpack.c.h.b16 %v195
    %v928 = vunpack.c.l.b16 %v196
    %v929 = vunpack.c.h.b16 %v196
    %v930 = vunpack.c.l.b16 %v197
    %v931 = vunpack.c.h.b16 %v197
    %v932 = vunpack.c.l.b16 %v198
    %v933 = vunpack.c.h.b16 %v198
    %v934 = vunpack.c.l.b16 %v199
    %v935 = vunpack.c.h.b16 %v199
    %v936 = vunpack.c.l.b16 %v200
    %v937 = vunpack.c.h.b16 %v200
    %v938 = vunpack.c.l.b16 %v201
    %v939 = vunpack.c.h.b16 %v201
    %v940 = vunpack.c.l.b16 %v202
    %v941 = vunpack.c.h.b16 %v202
    %v942 = vunpack.c.l.b16 %v203
    %v943 = vunpack.c.h.b16 %v203
    %v944 = vunpack.c.l.b16 %v204
    %v945 = vunpack.c.h.b16 %v204
    %v946 = vunpack.c.l.b16 %v205
    %v947 = vunpack.c.h.b16 %v205
    %v948 = vunpack.c.l.b16 %v206
    %v949 = vunpack.c.h.b16 %v206
    %v950 = vunpack.c.l.b16 %v207
    %v951 = vunpack.c.h.b16 %v207
    %v952 = vunpack.c.l.b16 %v208
    %v953 = vunpack.c.h.b16 %v208
    %v954 = vunpack.c.l.b16 %v209
    %v955 = vunpack.c.h.b16 %v209
    %v956 = vunpack.c.l.b16 %v210
    %v957 = vunpack.c.h.b16 %v210
    %v958 = vunpack.c.l.b16 %v211
    %v959 = vunpack.c.h.b16 %v211
    %v960 = vunpack.c.l.b16 %v212
    %v961 = vunpack.c.h.b16 %v212
    %v962 = vunpack.c.l.b16 %v213
    %v963 = vunpack.c.h.b16 %v213
    %v964 = vunpack.c.l.b16 %v214
    %v965 = vunpack.c.h.b16 %v214
    %v966 = vunpack.c.l.b16 %v215
    %v967 = vunpack.c.h.b16 %v215
    %v968 = vunpack.c.l.b16 %v216
    %v969 = vunpack.c.h.b16 %v216
    %v970 = vunpack.c.l.b16 %v217
    %v971 = vunpack.c.h.b16 %v217
    %v972 = vunpack.c.l.b16 %v218
    %v973 = vunpack.c.h.b16 %v218
    %v974 = vunpack.c.l.b16 %v219
    %v975 = vunpack.c.h.b16 %v219
    %v976 = vunpack.c.l.b16 %v220
    %v977 = vunpack.c.h.b16 %v220
    %v978 = vunpack.c.l.b16 %v221
    %v979 = vunpack.c.h.b16 %v221
    %v980 = vunpack.c.l.b16 %v222
    %v981 = vunpack.c.h.b16 %v222
    %v982 = vunpack.c.l.b16 %v223
    %v983 = vunpack.c.h.b16 %v223
    %v984 = vunpack.c.l.b16 %v224
    %v985 = vunpack.c.h.b16 %v224
    %v986 = vunpack.c.l.b16 %v225
    %v987 = vunpack.c.h.b16 %v225
    %v988 = vunpack.c.l.b16 %v226
    %v989 = vunpack.c.h.b16 %v226
    %v990 = vunpack.c.l.b16 %v227
    %v991 = vunpack.c.h.b16 %v227
    %v992 = vunpack.c.l.b16 %v228
    %v993 = vunpack.c.h.b16 %v228
    %v994 = vunpack.c.l.b16 %v229
    %v995 = vunpack.c.h.b16 %v229
    %v996 = vunpack.c.l.b16 %v230
    %v997 = vunpack.c.h.b16 %v230
    %v998 = vunpack.c.l.b16 %v231
    %v999 = vunpack.c.h.b16 %v231
    %v1000 = vunpack.c.l.b16 %v232
    %v1001 = vunpack.c.h.b16 %v232
    %v1002 = vunpack.c.l.b16 %v233
    %v1003 = vunpack.c.h.b16 %v233
    %v1004 = vunpack.c.l.b16 %v234
    %v1005 = vunpack.c.h.b16 %v234
    %v1006 = vunpack.c.l.b16 %v235
    %v1007 = vunpack.c.h.b16 %v235
    %v1008 = vunpack.c.l.b16 %v236
    %v1009 = vunpack.c.h.b16 %v236
    %v1010 = vunpack.c.l.b16 %v237
    %v1011 = vunpack.c.h.b16 %v237
    %v1012 = vunpack.c.l.b16 %v238
    %v1013 = vunpack.c.h.b16 %v238
    %v1014 = vunpack.c.l.b16 %v239
    %v1015 = vunpack.c.h.b16 %v239
    %v1016 = vunpack.c.l.b16 %v240
    %v1017 = vunpack.c.h.b16 %v240
    %v1018 = vunpack.c.l.b16 %v241
    %v1019 = vunpack.c.h.b16 %v241
    %v1020 = vunpack.c.l.b16 %v242
    %v1021 = vunpack.c.h.b16 %v242
    %v1022 = vunpack.c.l.b16 %v243
    %v1023 = vunpack.c.h.b16 %v243
    %v1024 = vunpack.c.l.b16 %v244
    %v1025 = vunpack.c.h.b16 %v244
    %v1026 = vunpack.c.l.b16 %v245
    %v1027 = vunpack.c.h.b16 %v245
    %v1028 = vunpack.c.l.b16 %v246
    %v1029 = vunpack.c.h.b16 %v246
    %v1030 = vunpack.c.l.b16 %v247
    %v1031 = vunpack.c.h.b16 %v247
    %v1032 = vunpack.c.l.b16 %v248
    %v1033 = vunpack.c.h.b16 %v248
    %v1034 = vunpack.c.l.b16 %v249
    %v1035 = vunpack.c.h.b16 %v249
    %v1036 = vunpack.c.l.b16 %v250
    %v1037 = vunpack.c.h.b16 %v250
    %v1038 = vunpack.c.l.b16 %v251
    %v1039 = vunpack.c.h.b16 %v251
    %v1040 = vunpack.c.l.b16 %v252
    %v1041 = vunpack.c.h.b16 %v252
    %v1042 = vunpack.c.l.b16 %v253
    %v1043 = vunpack.c.h.b16 %v253
    %v1044 = vunpack.c.l.b16 %v254
    %v1045 = vunpack.c.h.b16 %v254
    %v1046 = vunpack.c.l.b16 %v255
    %v1047 = vunpack.c.h.b16 %v255
    %v1048 = vunpack.c.l.b16 %v256
    %v1049 = vunpack.c.h.b16 %v256
    %v1050 = vunpack.c.l.b16 %v257
    %v1051 = vunpack.c.h.b16 %v257
    %v1052 = vunpack.c.l.b16 %v258
    %v1053 = vunpack.c.h.b16 %v258
    %v1054 = vunpack.c.l.b16 %v259
    %v1055 = vunpack.c.h.b16 %v259
    %v1056 = vunpack.c.l.b16 %v260
    %v1057 = vunpack.c.h.b16 %v260
    %v1058 = vunpack.c.l.b16 %v261
    %v1059 = vunpack.c.h.b16 %v261
    %v1060 = vunpack.c.l.b16 %v262
    %v1061 = vunpack.c.h.b16 %v262
    %v1062 = vunpack.c.l.b16 %v263
    %v1063 = vunpack.c.h.b16 %v263
    %v1064 = vunpack.c.l.b16 %v264
    %v1065 = vunpack.c.h.b16 %v264
    %v1066 = vunpack.c.l.b16 %v265
    %v1067 = vunpack.c.h.b16 %v265
    %v1068 = vunpack.c.l.b16 %v266
    %v1069 = vunpack.c.h.b16 %v266
    %v1070 = vunpack.c.l.b16 %v267
    %v1071 = vunpack.c.h.b16 %v267
    %v1072 = vunpack.c.l.b16 %v268
    %v1073 = vunpack.c.h.b16 %v268
    %v1074 = vunpack.c.l.b16 %v269
    %v1075 = vunpack.c.h.b16 %v269
    %v1076 = vunpack.c.l.b16 %v270
    %v1077 = vunpack.c.h.b16 %v270
    %v1078 = vunpack.c.l.b16 %v271
    %v1079 = vunpack.c.h.b16 %v271
    %v1080 = vunpack.c.l.b16 %v272
    %v1081 = vunpack.c.h.b16 %v272
    %v1082 = vunpack.c.l.b16 %v273
    %v1083 = vunpack.c.h.b16 %v273
    %v1084 = vunpack.c.l.b16 %v274
    %v1085 = vunpack.c.h.b16 %v274
    %v1086 = vunpack.c.l.b16 %v275
    %v1087 = vunpack.c.h.b16 %v275
    %v1088 = vunpack.c.l.b16 %v276
    %v1089 = vunpack.c.h.b16 %v276
    %v1090 = vunpack.c.l.b16 %v277
    %v1091 = vunpack.c.h.b16 %v277
    %v1092 = vunpack.c.l.b16 %v278
    %v1093 = vunpack.c.h.b16 %v278
    %v1094 = vunpack.c.l.b16 %v279
    %v1095 = vunpack.c.h.b16 %v279
    %v1096 = vunpack.c.l.b16 %v280
    %v1097 = vunpack.c.h.b16 %v280
    %v1098 = vunpack.c.l.b16 %v281
    %v1099 = vunpack.c.h.b16 %v281
    %v1100 = vpack.c.b16 %v592, %v588
    %v1101 = vpack.c.b16 %v593, %v589
    %v1102 = vpack.c.b16 %v594, %v590
    %v1103 = vpack.c.b16 %v595, %v591
    %v1104 = vpack.c.b16 %v600, %v596
    %v1105 = vpack.c.b16 %v601, %v597
    %v1106 = vpack.c.b16 %v602, %v598
    %v1107 = vpack.c.b16 %v603, %v599
    %v1108 = vpack.c.b16 %v608, %v604
    %v1109 = vpack.c.b16 %v609, %v605
    %v1110 = vpack.c.b16 %v610, %v606
    %v1111 = vpack.c.b16 %v611, %v607
    %v1112 = vpack.c.b16 %v616, %v612
    %v1113 = vpack.c.b16 %v617, %v613
    %v1114 = vpack.c.b16 %v618, %v614
    %v1115 = vpack.c.b16 %v619, %v615
    %v1116 = vpack.c.b16 %v624, %v620
    %v1117 = vpack.c.b16 %v625, %v621
    %v1118 = vpack.c.b16 %v626, %v622
    %v1119 = vpack.c.b16 %v627, %v623
    %v1120 = vpack.c.b16 %v632, %v628
    %v1121 = vpack.c.b16 %v633, %v629
    %v1122 = vpack.c.b16 %v634, %v630
    %v1123 = vpack.c.b16 %v635, %v631
    %v1124 = vpack.c.b16 %v640, %v636
    %v1125 = vpack.c.b16 %v641, %v637
    %v1126 = vpack.c.b16 %v642, %v638
    %v1127 = vpack.c.b16 %v643, %v639
    %v1128 = vpack.c.b16 %v648, %v644
    %v1129 = vpack.c.b16 %v649, %v645
    %v1130 = vpack.c.b16 %v650, %v646
    %v1131 = vpack.c.b16 %v651, %v647
    %v1132 = vpack.c.b16 %v656, %v652
    %v1133 = vpack.c.b16 %v657, %v653
    %v1134 = vpack.c.b16 %v658, %v654
    %v1135 = vpack.c.b16 %v659, %v655
    %v1136 = vpack.c.b16 %v664, %v660
    %v1137 = vpack.c.b16 %v665, %v661
    %v1138 = vpack.c.b16 %v666, %v662
    %v1139 = vpack.c.b16 %v667, %v663
    %v1140 = vpack.c.b16 %v672, %v668
    %v1141 = vpack.c.b16 %v673, %v669
    %v1142 = vpack.c.b16 %v674, %v670
    %v1143 = vpack.c.b16 %v675, %v671
    %v1144 = vpack.c.b16 %v680, %v676
    %v1145 = vpack.c.b16 %v681, %v677
    %v1146 = vpack.c.b16 %v682, %v678
    %v1147 = vpack.c.b16 %v683, %v679
    %v1148 = vpack.c.b16 %v688, %v684
    %v1149 = vpack.c.b16 %v689, %v685
    %v1150 = vpack.c.b16 %v690, %v686
    %v1151 = vpack.c.b16 %v691, %v687
    %v1152 = vpack.c.b16 %v696, %v692
    %v1153 = vpack.c.b16 %v697, %v693
    %v1154 = vpack.c.b16 %v698, %v694
    %v1155 = vpack.c.b16 %v699, %v695
    %v1156 = vpack.c.b16 %v704, %v700
    %v1157 = vpack.c.b16 %v705, %v701
    %v1158 = vpack.c.b16 %v706, %v702
    %v1159 = vpack.c.b16 %v707, %v703
    %v1160 = vpack.c.b16 %v712, %v708
    %v1161 = vpack.c.b16 %v713, %v709
    %v1162 = vpack.c.b16 %v714, %v710
    %v1163 = vpack.c.b16 %v715, %v711
    %v1164 = vpack.c.b16 %v720, %v716
    %v1165 = vpack.c.b16 %v721, %v717
    %v1166 = vpack.c.b16 %v722, %v718
    %v1167 = vpack.c.b16 %v723, %v719
    %v1168 = vpack.c.b16 %v728, %v724
    %v1169 = vpack.c.b16 %v729, %v725
    %v1170 = vpack.c.b16 %v730, %v726
    %v1171 = vpack.c.b16 %v731, %v727
    %v1172 = vpack.c.b16 %v736, %v732
    %v1173 = vpack.c.b16 %v737, %v733
    %v1174 = vpack.c.b16 %v738, %v734
    %v1175 = vpack.c.b16 %v739, %v735
    %v1176 = vpack.c.b16 %v744, %v740
    %v1177 = vpack.c.b16 %v745, %v741
    %v1178 = vpack.c.b16 %v746, %v742
    %v1179 = vpack.c.b16 %v747, %v743
    %v1180 = vpack.c.b16 %v752, %v748
    %v1181 = vpack.c.b16 %v753, %v749
    %v1182 = vpack.c.b16 %v754, %v750
    %v1183 = vpack.c.b16 %v755, %v751
    %v1184 = vpack.c.b16 %v760, %v756
    %v1185 = vpack.c.b16 %v761, %v757
    %v1186 = vpack.c.b16 %v762, %v758
    %v1187 = vpack.c.b16 %v763, %v759
    %v1188 = vpack.c.b16 %v768, %v764
    %v1189 = vpack.c.b16 %v769, %v765
    %v1190 = vpack.c.b16 %v770, %v766
    %v1191 = vpack.c.b16 %v771, %v767
    %v1192 = vpack.c.b16 %v776, %v772
    %v1193 = vpack.c.b16 %v777, %v773
    %v1194 = vpack.c.b16 %v778, %v774
    %v1195 = vpack.c.b16 %v779, %v775
    %v1196 = vpack.c.b16 %v784, %v780
    %v1197 = vpack.c.b16 %v785, %v781
    %v1198 = vpack.c.b16 %v786, %v782
    %v1199 = vpack.c.b16 %v787, %v783
    %v1200 = vpack.c.b16 %v792, %v788
    %v1201 = vpack.c.b16 %v793, %v789
    %v1202 = vpack.c.b16 %v794, %v790
    %v1203 = vpack.c.b16 %v795, %v791
    %v1204 = vpack.c.b16 %v800, %v796
    %v1205 = vpack.c.b16 %v801, %v797
    %v1206 = vpack.c.b16 %v802, %v798
    %v1207 = vpack.c.b16 %v803, %v799
    %v1208 = vpack.c.b16 %v808, %v804
    %v1209 = vpack.c.b16 %v809, %v805
    %v1210 = vpack.c.b16 %v810, %v806
    %v1211 = vpack.c.b16 %v811, %v807
    %v1212 = vpack.c.b16 %v816, %v812
    %v1213 = vpack.c.b16 %v817, %v813
    %v1214 = vpack.c.b16 %v818, %v814
    %v1215 = vpack.c.b16 %v819, %v815
    %v1216 = vpack.c.b16 %v824, %v820
    %v1217 = vpack.c.b16 %v825, %v821
    %v1218 = vpack.c.b16 %v826, %v822
    %v1219 = vpack.c.b16 %v827, %v823
    %v1220 = vpack.c.b16 %v832, %v828
    %v1221 = vpack.c.b16 %v833, %v829
    %v1222 = vpack.c.b16 %v834, %v830
    %v1223 = vpack.c.b16 %v835, %v831
    %v1224 = vpack.c.b16 %v840, %v836
    %v1225 = vpack.c.b16 %v841, %v837
    %v1226 = vpack.c.b16 %v842, %v838
    %v1227 = vpack.c.b16 %v843, %v839
    %v1228 = vpack.c.b16 %v848, %v844
    %v1229 = vpack.c.b16 %v849, %v845
    %v1230 = vpack.c.b16 %v850, %v846
    %v1231 = vpack.c.b16 %v851, %v847
    %v1232 = vpack.c.b16 %v856, %v852
    %v1233 = vpack.c.b16 %v857, %v853
    %v1234 = vpack.c.b16 %v858, %v854
    %v1235 = vpack.c.b16 %v859, %v855
    %v1236 = vpack.c.b16 %v864, %v860
    %v1237 = vpack.c.b16 %v865, %v861
    %v1238 = vpack.c.b16 %v866, %v862
    %v1239 = vpack.c.b16 %v867, %v863
    %v1240 = vpack.c.b16 %v872, %v868
    %v1241 = vpack.c.b16 %v873, %v869
    %v1242 = vpack.c.b16 %v874, %v870
    %v1243 = vpack.c.b16 %v875, %v871
    %v1244 = vpack.c.b16 %v880, %v876
    %v1245 = vpack.c.b16 %v881, %v877
    %v1246 = vpack.c.b16 %v882, %v878
    %v1247 = vpack.c.b16 %v883, %v879
    %v1248 = vpack.c.b16 %v888, %v884
    %v1249 = vpack.c.b16 %v889, %v885
    %v1250 = vpack.c.b16 %v890, %v886
    %v1251 = vpack.c.b16 %v891, %v887
    %v1252 = vpack.c.b16 %v896, %v892
    %v1253 = vpack.c.b16 %v897, %v893
    %v1254 = vpack.c.b16 %v898, %v894
    %v1255 = vpack.c.b16 %v899, %v895
    %v1256 = vpack.c.b16 %v904, %v900
    %v1257 = vpack.c.b16 %v905, %v901
    %v1258 = vpack.c.b16 %v906, %v902
    %v1259 = vpack.c.b16 %v907, %v903
    %v1260 = vpack.c.b16 %v912, %v908
    %v1261 = vpack.c.b16 %v913, %v909
    %v1262 = vpack.c.b16 %v914, %v910
    %v1263 = vpack.c.b16 %v915, %v911
    %v1264 = vpack.c.b16 %v920, %v916
    %v1265 = vpack.c.b16 %v921, %v917
    %v1266 = vpack.c.b16 %v922, %v918
    %v1267 = vpack.c.b16 %v923, %v919
    %v1268 = vpack.c.b16 %v928, %v924
    %v1269 = vpack.c.b16 %v929, %v925
    %v1270 = vpack.c.b16 %v930, %v926
    %v1271 = vpack.c.b16 %v931, %v927
    %v1272 = vpack.c.b16 %v936, %v932
    %v1273 = vpack.c.b16 %v937, %v933
    %v1274 = vpack.c.b16 %v938, %v934
    %v1275 = vpack.c.b16 %v939, %v935
    %v1276 = vpack.c.b16 %v944, %v940
    %v1277 = vpack.c.b16 %v945, %v941
    %v1278 = vpack.c.b16 %v946, %v942
    %v1279 = vpack.c.b16 %v947, %v943
    %v1280 = vpack.c.b16 %v952, %v948
    %v1281 = vpack.c.b16 %v953, %v949
    %v1282 = vpack.c.b16 %v954, %v950
    %v1283 = vpack.c.b16 %v955, %v951
    %v1284 = vpack.c.b16 %v960, %v956
    %v1285 = vpack.c.b16 %v961, %v957
    %v1286 = vpack.c.b16 %v962, %v958
    %v1287 = vpack.c.b16 %v963, %v959
    %v1288 = vpack.c.b16 %v968, %v964
    %v1289 = vpack.c.b16 %v969, %v965
    %v1290 = vpack.c.b16 %v970, %v966
    %v1291 = vpack.c.b16 %v971, %v967
    %v1292 = vpack.c.b16 %v976, %v972
    %v1293 = vpack.c.b16 %v977, %v973
    %v1294 = vpack.c.b16 %v978, %v974
    %v1295 = vpack.c.b16 %v979, %v975
    %v1296 = vpack.c.b16 %v984, %v980
    %v1297 = vpack.c.b16 %v985, %v981
    %v1298 = vpack.c.b16 %v986, %v982
    %v1299 = vpack.c.b16 %v987, %v983
    %v1300 = vpack.c.b16 %v992, %v988
    %v1301 = vpack.c.b16 %v993, %v989
    %v1302 = vpack.c.b16 %v994, %v990
    %v1303 = vpack.c.b16 %v995, %v991
    %v1304 = vpack.c.b16 %v1000, %v996
    %v1305 = vpack.c.b16 %v1001, %v997
    %v1306 = vpack.c.b16 %v1002, %v998
    %v1307 = vpack.c.b16 %v1003, %v999
    %v1308 = vpack.c.b16 %v1008, %v1004
    %v1309 = vpack.c.b16 %v1009, %v1005
    %v1310 = vpack.c.b16 %v1010, %v1006
    %v1311 = vpack.c.b16 %v1011, %v1007
    %v1312 = vpack.c.b16 %v1016, %v1012
    %v1313 = vpack.c.b16 %v1017, %v1013
    %v1314 = vpack.c.b16 %v1018, %v1014
    %v1315 = vpack.c.b16 %v1019, %v1015
    %v1316 = vpack.c.b16 %v1024, %v1020
    %v1317 = vpack.c.b16 %v1025, %v1021
    %v1318 = vpack.c.b16 %v1026, %v1022
    %v1319 = vpack.c.b16 %v1027, %v1023
    %v1320 = vpack.c.b16 %v1032, %v1028
    %v1321 = vpack.c.b16 %v1033, %v1029
    %v1322 = vpack.c.b16 %v1034, %v1030
    %v1323 = vpack.c.b16 %v1035, %v1031
    %v1324 = vpack.c.b16 %v1040, %v1036
    %v1325 = vpack.c.b16 %v1041, %v1037
    %v1326 = vpack.c.b16 %v1042, %v1038
    %v1327 = vpack.c.b16 %v1043, %v1039
    %v1328 = vpack.c.b16 %v1048, %v1044
    %v1329 = vpack.c.b16 %v1049, %v1045
    %v1330 = vpack.c.b16 %v1050, %v1046
    %v1331 = vpack.c.b16 %v1051, %v1047
    %v1332 = vpack.c.b16 %v1056, %v1052
    %v1333 = vpack.c.b16 %v1057, %v1053
    %v1334 = vpack.c.b16 %v1058, %v1054
    %v1335 = vpack.c.b16 %v1059, %v1055
    %v1336 = vpack.c.b16 %v1064, %v1060
    %v1337 = vpack.c.b16 %v1065, %v1061
    %v1338 = vpack.c.b16 %v1066, %v1062
    %v1339 = vpack.c.b16 %v1067, %v1063
    %v1340 = vpack.c.b16 %v1072, %v1068
    %v1341 = vpack.c.b16 %v1073, %v1069
    %v1342 = vpack.c.b16 %v1074, %v1070
    %v1343 = vpack.c.b16 %v1075, %v1071
    %v1344 = vpack.c.b16 %v1080, %v1076
    %v1345 = vpack.c.b16 %v1081, %v1077
    %v1346 = vpack.c.b16 %v1082, %v1078
    %v1347 = vpack.c.b16 %v1083, %v1079
    %v1348 = vpack.c.b16 %v1088, %v1084
    %v1349 = vpack.c.b16 %v1089, %v1085
    %v1350 = vpack.c.b16 %v1090, %v1086
    %v1351 = vpack.c.b16 %v1091, %v1087
    %v1352 = vpack.c.b16 %v1096, %v1092
    %v1353 = vpack.c.b16 %v1097, %v1093
    %v1354 = vpack.c.b16 %v1098, %v1094
    %v1355 = vpack.c.b16 %v1099, %v1095
    %1612 = vmatprep.subr.bf16.mxu0 %v1101
    %1613 = vmatpush1.bf16.msra.mxu0 %v1100
    %1614 = vmatprep.subr.bf16.mxu0 %v1105
    %1615 = vmatpush1.bf16.msra.mxu0 %v1104
    %1616 = vmatprep.subr.bf16.mxu0 %v1109
    %1617 = vmatpush1.bf16.msra.mxu0 %v1108
    %1618 = vmatprep.subr.bf16.mxu0 %v1113
    %1619 = vmatpush1.bf16.msra.mxu0 %v1112
    %1620 = vmatprep.subr.bf16.mxu0 %v1117
    %1621 = vmatpush1.bf16.msra.mxu0 %v1116
    %1622 = vmatprep.subr.bf16.mxu0 %v1121
    %1623 = vmatpush1.bf16.msra.mxu0 %v1120
    %1624 = vmatprep.subr.bf16.mxu0 %v1125
    %1625 = vmatpush1.bf16.msra.mxu0 %v1124
    %1626 = vmatprep.subr.bf16.mxu0 %v1129
    %1627 = vmatpush1.bf16.msra.mxu0 %v1128
    %1628 = vmatprep.subr.bf16.mxu0 %v1133
    %1629 = vmatpush1.bf16.msra.mxu0 %v1132
    %1630 = vmatprep.subr.bf16.mxu0 %v1137
    %1631 = vmatpush1.bf16.msra.mxu0 %v1136
    %1632 = vmatprep.subr.bf16.mxu0 %v1141
    %1633 = vmatpush1.bf16.msra.mxu0 %v1140
    %1634 = vmatprep.subr.bf16.mxu0 %v1145
    %1635 = vmatpush1.bf16.msra.mxu0 %v1144
    %1636 = vmatprep.subr.bf16.mxu0 %v1149
    %1637 = vmatpush1.bf16.msra.mxu0 %v1148
    %1638 = vmatprep.subr.bf16.mxu0 %v1153
    %1639 = vmatpush1.bf16.msra.mxu0 %v1152
    %1640 = vmatprep.subr.bf16.mxu0 %v1157
    %1641 = vmatpush1.bf16.msra.mxu0 %v1156
    %1642 = vmatprep.subr.bf16.mxu0 %v1161
    %1643 = vmatpush1.bf16.msra.mxu0 %v1160
    %1644 = vmatprep.mubr.bf16.mxu0 %v317
    %1645 = vmatmul.mubr.bf16.gmra.mrb[0].mxu0 %v316
    %v1646 = vpop.f32.mrb[0].mxu0
    %v1647 = vadd.f32 %v287, %v1646
    %v1648 = vpop.f32.mrb[0].mxu0
    %v1649 = vadd.f32 %v291, %v1648
    %v1650 = vpop.f32.mrb[0].mxu0
    %v1651 = vpop.f32.mrb[0].mxu0
    %1652 = vdwg.mxu0
    %1653 = vmatprep.subr.bf16.mxu0 %v1165
    %1654 = vmatpush1.bf16.msra.mxu0 %v1164
    %1655 = vmatprep.subr.bf16.mxu0 %v1169
    %1656 = vmatpush1.bf16.msra.mxu0 %v1168
    %1657 = vmatprep.subr.bf16.mxu0 %v1173
    %1658 = vmatpush1.bf16.msra.mxu0 %v1172
    %1659 = vmatprep.subr.bf16.mxu0 %v1177
    %1660 = vmatpush1.bf16.msra.mxu0 %v1176
    %1661 = vmatprep.subr.bf16.mxu0 %v1181
    %1662 = vmatpush1.bf16.msra.mxu0 %v1180
    %1663 = vmatprep.subr.bf16.mxu0 %v1185
    %1664 = vmatpush1.bf16.msra.mxu0 %v1184
    %1665 = vmatprep.subr.bf16.mxu0 %v1189
    %1666 = vmatpush1.bf16.msra.mxu0 %v1188
    %1667 = vmatprep.subr.bf16.mxu0 %v1193
    %1668 = vmatpush1.bf16.msra.mxu0 %v1192
    %1669 = vmatprep.subr.bf16.mxu0 %v1197
    %1670 = vmatpush1.bf16.msra.mxu0 %v1196
    %1671 = vmatprep.subr.bf16.mxu0 %v1201
    %1672 = vmatpush1.bf16.msra.mxu0 %v1200
    %1673 = vmatprep.subr.bf16.mxu0 %v1205
    %1674 = vmatpush1.bf16.msra.mxu0 %v1204
    %1675 = vmatprep.subr.bf16.mxu0 %v1209
    %1676 = vmatpush1.bf16.msra.mxu0 %v1208
    %1677 = vmatprep.subr.bf16.mxu0 %v1213
    %1678 = vmatpush1.bf16.msra.mxu0 %v1212
    %1679 = vmatprep.subr.bf16.mxu0 %v1217
    %1680 = vmatpush1.bf16.msra.mxu0 %v1216
    %1681 = vmatprep.subr.bf16.mxu0 %v1221
    %1682 = vmatpush1.bf16.msra.mxu0 %v1220
    %1683 = vmatprep.subr.bf16.mxu0 %v1225
    %1684 = vmatpush1.bf16.msra.mxu0 %v1224
    %1685 = vmatprep.mubr.bf16.mxu0 %v319
    %1686 = vmatmul.mubr.bf16.gmra.mrb[0].mxu0 %v318
    %v1687 = vpop.f32.mrb[0].mxu0
    %v1688 = vadd.f32 %v1647, %v1687
    %v1689 = vpop.f32.mrb[0].mxu0
    %v1690 = vadd.f32 %v1649, %v1689
    %v1691 = vpop.f32.mrb[0].mxu0
    %v1692 = vpop.f32.mrb[0].mxu0
    %1693 = vdwg.mxu0
    %1694 = vmatprep.subr.bf16.mxu0 %v1229
    %1695 = vmatpush1.bf16.msra.mxu0 %v1228
    %1696 = vmatprep.subr.bf16.mxu0 %v1233
    %1697 = vmatpush1.bf16.msra.mxu0 %v1232
    %1698 = vmatprep.subr.bf16.mxu0 %v1237
    %1699 = vmatpush1.bf16.msra.mxu0 %v1236
    %1700 = vmatprep.subr.bf16.mxu0 %v1241
    %1701 = vmatpush1.bf16.msra.mxu0 %v1240
    %1702 = vmatprep.subr.bf16.mxu0 %v1245
    %1703 = vmatpush1.bf16.msra.mxu0 %v1244
    %1704 = vmatprep.subr.bf16.mxu0 %v1249
    %1705 = vmatpush1.bf16.msra.mxu0 %v1248
    %1706 = vmatprep.subr.bf16.mxu0 %v1253
    %1707 = vmatpush1.bf16.msra.mxu0 %v1252
    %1708 = vmatprep.subr.bf16.mxu0 %v1257
    %1709 = vmatpush1.bf16.msra.mxu0 %v1256
    %1710 = vmatprep.subr.bf16.mxu0 %v1261
    %1711 = vmatpush1.bf16.msra.mxu0 %v1260
    %1712 = vmatprep.subr.bf16.mxu0 %v1265
    %1713 = vmatpush1.bf16.msra.mxu0 %v1264
    %1714 = vmatprep.subr.bf16.mxu0 %v1269
    %1715 = vmatpush1.bf16.msra.mxu0 %v1268
    %1716 = vmatprep.subr.bf16.mxu0 %v1273
    %1717 = vmatpush1.bf16.msra.mxu0 %v1272
    %1718 = vmatprep.subr.bf16.mxu0 %v1277
    %1719 = vmatpush1.bf16.msra.mxu0 %v1276
    %1720 = vmatprep.subr.bf16.mxu0 %v1281
    %1721 = vmatpush1.bf16.msra.mxu0 %v1280
    %1722 = vmatprep.subr.bf16.mxu0 %v1285
    %1723 = vmatpush1.bf16.msra.mxu0 %v1284
    %1724 = vmatprep.subr.bf16.mxu0 %v1289
    %1725 = vmatpush1.bf16.msra.mxu0 %v1288
    %1726 = vmatprep.mubr.bf16.mxu0 %v321
    %1727 = vmatmul.mubr.bf16.gmra.mrb[0].mxu0 %v320
    %v1728 = vpop.f32.mrb[0].mxu0
    %v1729 = vadd.f32 %v1688, %v1728
    %v1730 = vpop.f32.mrb[0].mxu0
    %v1731 = vadd.f32 %v1690, %v1730
    %v1732 = vpop.f32.mrb[0].mxu0
    %v1733 = vpop.f32.mrb[0].mxu0
    %1734 = vdwg.mxu0
    %1735 = vmatprep.subr.bf16.mxu0 %v1293
    %1736 = vmatpush1.bf16.msra.mxu0 %v1292
    %1737 = vmatprep.subr.bf16.mxu0 %v1297
    %1738 = vmatpush1.bf16.msra.mxu0 %v1296
    %1739 = vmatprep.subr.bf16.mxu0 %v1301
    %1740 = vmatpush1.bf16.msra.mxu0 %v1300
    %1741 = vmatprep.subr.bf16.mxu0 %v1305
    %1742 = vmatpush1.bf16.msra.mxu0 %v1304
    %1743 = vmatprep.subr.bf16.mxu0 %v1309
    %1744 = vmatpush1.bf16.msra.mxu0 %v1308
    %1745 = vmatprep.subr.bf16.mxu0 %v1313
    %1746 = vmatpush1.bf16.msra.mxu0 %v1312
    %1747 = vmatprep.subr.bf16.mxu0 %v1317
    %1748 = vmatpush1.bf16.msra.mxu0 %v1316
    %1749 = vmatprep.subr.bf16.mxu0 %v1321
    %1750 = vmatpush1.bf16.msra.mxu0 %v1320
    %1751 = vmatprep.subr.bf16.mxu0 %v1325
    %1752 = vmatpush1.bf16.msra.mxu0 %v1324
    %1753 = vmatprep.subr.bf16.mxu0 %v1329
    %1754 = vmatpush1.bf16.msra.mxu0 %v1328
    %1755 = vmatprep.subr.bf16.mxu0 %v1333
    %1756 = vmatpush1.bf16.msra.mxu0 %v1332
    %1757 = vmatprep.subr.bf16.mxu0 %v1337
    %1758 = vmatpush1.bf16.msra.mxu0 %v1336
    %1759 = vmatprep.subr.bf16.mxu0 %v1341
    %1760 = vmatpush1.bf16.msra.mxu0 %v1340
    %1761 = vmatprep.subr.bf16.mxu0 %v1345
    %1762 = vmatpush1.bf16.msra.mxu0 %v1344
    %1763 = vmatprep.subr.bf16.mxu0 %v1349
    %1764 = vmatpush1.bf16.msra.mxu0 %v1348
    %1765 = vmatprep.subr.bf16.mxu0 %v1353
    %1766 = vmatpush1.bf16.msra.mxu0 %v1352
    %1767 = vmatprep.mubr.bf16.mxu0 %v323
    %1768 = vmatmul.mubr.bf16.gmra.mrb[0].mxu0 %v322
    %v1769 = vpop.f32.mrb[0].mxu0
    %v1770 = vadd.f32 %v1729, %v1769
    %v1771 = vpop.f32.mrb[0].mxu0
    %v1772 = vadd.f32 %v1731, %v1771
    %v1773 = vpop.f32.mrb[0].mxu0
    %v1774 = vpop.f32.mrb[0].mxu0
    %1775 = vdwg.mxu0
    %1776 = vmatprep.subr.bf16.mxu0 %v1103
    %1777 = vmatpush1.bf16.msra.mxu0 %v1102
    %1778 = vmatprep.subr.bf16.mxu0 %v1107
    %1779 = vmatpush1.bf16.msra.mxu0 %v1106
    %1780 = vmatprep.subr.bf16.mxu0 %v1111
    %1781 = vmatpush1.bf16.msra.mxu0 %v1110
    %1782 = vmatprep.subr.bf16.mxu0 %v1115
    %1783 = vmatpush1.bf16.msra.mxu0 %v1114
    %1784 = vmatprep.subr.bf16.mxu0 %v1119
    %1785 = vmatpush1.bf16.msra.mxu0 %v1118
    %1786 = vmatprep.subr.bf16.mxu0 %v1123
    %1787 = vmatpush1.bf16.msra.mxu0 %v1122
    %1788 = vmatprep.subr.bf16.mxu0 %v1127
    %1789 = vmatpush1.bf16.msra.mxu0 %v1126
    %1790 = vmatprep.subr.bf16.mxu0 %v1131
    %1791 = vmatpush1.bf16.msra.mxu0 %v1130
    %1792 = vmatprep.subr.bf16.mxu0 %v1135
    %1793 = vmatpush1.bf16.msra.mxu0 %v1134
    %1794 = vmatprep.subr.bf16.mxu0 %v1139
    %1795 = vmatpush1.bf16.msra.mxu0 %v1138
    %1796 = vmatprep.subr.bf16.mxu0 %v1143
    %1797 = vmatpush1.bf16.msra.mxu0 %v1142
    %1798 = vmatprep.subr.bf16.mxu0 %v1147
    %1799 = vmatpush1.bf16.msra.mxu0 %v1146
    %1800 = vmatprep.subr.bf16.mxu0 %v1151
    %1801 = vmatpush1.bf16.msra.mxu0 %v1150
    %1802 = vmatprep.subr.bf16.mxu0 %v1155
    %1803 = vmatpush1.bf16.msra.mxu0 %v1154
    %1804 = vmatprep.subr.bf16.mxu0 %v1159
    %1805 = vmatpush1.bf16.msra.mxu0 %v1158
    %1806 = vmatprep.subr.bf16.mxu0 %v1163
    %1807 = vmatpush1.bf16.msra.mxu0 %v1162
    %1808 = vmatprep.mubr.bf16.mxu0 %v317
    %1809 = vmatmul.mubr.bf16.gmra.mrb[0].mxu0 %v316
    %v1810 = vpop.f32.mrb[0].mxu0
    %v1811 = vadd.f32 %v295, %v1810
    %v1812 = vpop.f32.mrb[0].mxu0
    %v1813 = vadd.f32 %v299, %v1812
    %v1814 = vpop.f32.mrb[0].mxu0
    %v1815 = vpop.f32.mrb[0].mxu0
    %1816 = vdwg.mxu0
    %1817 = vmatprep.subr.bf16.mxu0 %v1167
    %1818 = vmatpush1.bf16.msra.mxu0 %v1166
    %1819 = vmatprep.subr.bf16.mxu0 %v1171
    %1820 = vmatpush1.bf16.msra.mxu0 %v1170
    %1821 = vmatprep.subr.bf16.mxu0 %v1175
    %1822 = vmatpush1.bf16.msra.mxu0 %v1174
    %1823 = vmatprep.subr.bf16.mxu0 %v1179
    %1824 = vmatpush1.bf16.msra.mxu0 %v1178
    %1825 = vmatprep.subr.bf16.mxu0 %v1183
    %1826 = vmatpush1.bf16.msra.mxu0 %v1182
    %1827 = vmatprep.subr.bf16.mxu0 %v1187
    %1828 = vmatpush1.bf16.msra.mxu0 %v1186
    %1829 = vmatprep.subr.bf16.mxu0 %v1191
    %1830 = vmatpush1.bf16.msra.mxu0 %v1190
    %1831 = vmatprep.subr.bf16.mxu0 %v1195
    %1832 = vmatpush1.bf16.msra.mxu0 %v1194
    %1833 = vmatprep.subr.bf16.mxu0 %v1199
    %1834 = vmatpush1.bf16.msra.mxu0 %v1198
    %1835 = vmatprep.subr.bf16.mxu0 %v1203
    %1836 = vmatpush1.bf16.msra.mxu0 %v1202
    %1837 = vmatprep.subr.bf16.mxu0 %v1207
    %1838 = vmatpush1.bf16.msra.mxu0 %v1206
    %1839 = vmatprep.subr.bf16.mxu0 %v1211
    %1840 = vmatpush1.bf16.msra.mxu0 %v1210
    %1841 = vmatprep.subr.bf16.mxu0 %v1215
    %1842 = vmatpush1.bf16.msra.mxu0 %v1214
    %1843 = vmatprep.subr.bf16.mxu0 %v1219
    %1844 = vmatpush1.bf16.msra.mxu0 %v1218
    %1845 = vmatprep.subr.bf16.mxu0 %v1223
    %1846 = vmatpush1.bf16.msra.mxu0 %v1222
    %1847 = vmatprep.subr.bf16.mxu0 %v1227
    %1848 = vmatpush1.bf16.msra.mxu0 %v1226
    %1849 = vmatprep.mubr.bf16.mxu0 %v319
    %1850 = vmatmul.mubr.bf16.gmra.mrb[0].mxu0 %v318
    %v1851 = vpop.f32.mrb[0].mxu0
    %v1852 = vadd.f32 %v1811, %v1851
    %v1853 = vpop.f32.mrb[0].mxu0
    %v1854 = vadd.f32 %v1813, %v1853
    %v1855 = vpop.f32.mrb[0].mxu0
    %v1856 = vpop.f32.mrb[0].mxu0
    %1857 = vdwg.mxu0
    %1858 = vmatprep.subr.bf16.mxu0 %v1231
    %1859 = vmatpush1.bf16.msra.mxu0 %v1230
    %1860 = vmatprep.subr.bf16.mxu0 %v1235
    %1861 = vmatpush1.bf16.msra.mxu0 %v1234
    %1862 = vmatprep.subr.bf16.mxu0 %v1239
    %1863 = vmatpush1.bf16.msra.mxu0 %v1238
    %1864 = vmatprep.subr.bf16.mxu0 %v1243
    %1865 = vmatpush1.bf16.msra.mxu0 %v1242
    %1866 = vmatprep.subr.bf16.mxu0 %v1247
    %1867 = vmatpush1.bf16.msra.mxu0 %v1246
    %1868 = vmatprep.subr.bf16.mxu0 %v1251
    %1869 = vmatpush1.bf16.msra.mxu0 %v1250
    %1870 = vmatprep.subr.bf16.mxu0 %v1255
    %1871 = vmatpush1.bf16.msra.mxu0 %v1254
    %1872 = vmatprep.subr.bf16.mxu0 %v1259
    %1873 = vmatpush1.bf16.msra.mxu0 %v1258
    %1874 = vmatprep.subr.bf16.mxu0 %v1263
    %1875 = vmatpush1.bf16.msra.mxu0 %v1262
    %1876 = vmatprep.subr.bf16.mxu0 %v1267
    %1877 = vmatpush1.bf16.msra.mxu0 %v1266
    %1878 = vmatprep.subr.bf16.mxu0 %v1271
    %1879 = vmatpush1.bf16.msra.mxu0 %v1270
    %1880 = vmatprep.subr.bf16.mxu0 %v1275
    %1881 = vmatpush1.bf16.msra.mxu0 %v1274
    %1882 = vmatprep.subr.bf16.mxu0 %v1279
    %1883 = vmatpush1.bf16.msra.mxu0 %v1278
    %1884 = vmatprep.subr.bf16.mxu0 %v1283
    %1885 = vmatpush1.bf16.msra.mxu0 %v1282
    %1886 = vmatprep.subr.bf16.mxu0 %v1287
    %1887 = vmatpush1.bf16.msra.mxu0 %v1286
    %1888 = vmatprep.subr.bf16.mxu0 %v1291
    %1889 = vmatpush1.bf16.msra.mxu0 %v1290
    %1890 = vmatprep.mubr.bf16.mxu0 %v321
    %1891 = vmatmul.mubr.bf16.gmra.mrb[0].mxu0 %v320
    %v1892 = vpop.f32.mrb[0].mxu0
    %v1893 = vadd.f32 %v1852, %v1892
    %v1894 = vpop.f32.mrb[0].mxu0
    %v1895 = vadd.f32 %v1854, %v1894
    %v1896 = vpop.f32.mrb[0].mxu0
    %v1897 = vpop.f32.mrb[0].mxu0
    %1898 = vdwg.mxu0
    %1899 = vmatprep.subr.bf16.mxu0 %v1295
    %1900 = vmatpush1.bf16.msra.mxu0 %v1294
    %1901 = vmatprep.subr.bf16.mxu0 %v1299
    %1902 = vmatpush1.bf16.msra.mxu0 %v1298
    %1903 = vmatprep.subr.bf16.mxu0 %v1303
    %1904 = vmatpush1.bf16.msra.mxu0 %v1302
    %1905 = vmatprep.subr.bf16.mxu0 %v1307
    %1906 = vmatpush1.bf16.msra.mxu0 %v1306
    %1907 = vmatprep.subr.bf16.mxu0 %v1311
    %1908 = vmatpush1.bf16.msra.mxu0 %v1310
    %1909 = vmatprep.subr.bf16.mxu0 %v1315
    %1910 = vmatpush1.bf16.msra.mxu0 %v1314
    %1911 = vmatprep.subr.bf16.mxu0 %v1319
    %1912 = vmatpush1.bf16.msra.mxu0 %v1318
    %1913 = vmatprep.subr.bf16.mxu0 %v1323
    %1914 = vmatpush1.bf16.msra.mxu0 %v1322
    %1915 = vmatprep.subr.bf16.mxu0 %v1327
    %1916 = vmatpush1.bf16.msra.mxu0 %v1326
    %1917 = vmatprep.subr.bf16.mxu0 %v1331
    %1918 = vmatpush1.bf16.msra.mxu0 %v1330
    %1919 = vmatprep.subr.bf16.mxu0 %v1335
    %1920 = vmatpush1.bf16.msra.mxu0 %v1334
    %1921 = vmatprep.subr.bf16.mxu0 %v1339
    %1922 = vmatpush1.bf16.msra.mxu0 %v1338
    %1923 = vmatprep.subr.bf16.mxu0 %v1343
    %1924 = vmatpush1.bf16.msra.mxu0 %v1342
    %1925 = vmatprep.subr.bf16.mxu0 %v1347
    %1926 = vmatpush1.bf16.msra.mxu0 %v1346
    %1927 = vmatprep.subr.bf16.mxu0 %v1351
    %1928 = vmatpush1.bf16.msra.mxu0 %v1350
    %1929 = vmatprep.subr.bf16.mxu0 %v1355
    %1930 = vmatpush1.bf16.msra.mxu0 %v1354
    %1931 = vmatprep.mubr.bf16.mxu0 %v323
    %1932 = vmatmul.mubr.bf16.gmra.mrb[0].mxu0 %v322
    %v1933 = vpop.f32.mrb[0].mxu0
    %v1934 = vadd.f32 %v1893, %v1933
    %v1935 = vpop.f32.mrb[0].mxu0
    %v1936 = vadd.f32 %v1895, %v1935
    %v1937 = vpop.f32.mrb[0].mxu0
    %v1938 = vpop.f32.mrb[0].mxu0
    %1939 = vdwg.mxu0
    %v1940 = vtanh.pop %v1770
    %v1941 = vtanh.pop %v1772
    %v1942 = vtanh.pop %v1934
    %v1943 = vtanh.pop %v1936
    %v1944 = vpack.c.bf16 %v1940, %v1940
    %v1945 = vpack.c.bf16 %v1941, %v1941
    %v1946 = vpack.c.bf16 %v1942, %v1942
    %v1947 = vpack.c.bf16 %v1943, %v1943
    %v1948 = vld [vmem:[%s3] sm:$0xf]
    %v1949 = vld [vmem:[%s3 + $0x4] sm:$0xf]
    %v1950 = vld [vmem:[%s3 + $0x8] sm:$0xf]
    %v1951 = vld [vmem:[%s3 + $0xc] sm:$0xf]
    %v1952 = vld [vmem:[%s3 + $0x10] sm:$0xf]
    %v1953 = vld [vmem:[%s3 + $0x14] sm:$0xf]
    %v1954 = vld [vmem:[%s3 + $0x18] sm:$0xf]
    %v1955 = vld [vmem:[%s3 + $0x1c] sm:$0xf]
    %v1956 = vld [vmem:[%s3 + $0x20] sm:$0xf]
    %v1957 = vld [vmem:[%s3 + $0x24] sm:$0xf]
    %v1958 = vld [vmem:[%s3 + $0x28] sm:$0xf]
    %v1959 = vld [vmem:[%s3 + $0x2c] sm:$0xf]
    %v1960 = vld [vmem:[%s3 + $0x30] sm:$0xf]
    %v1961 = vld [vmem:[%s3 + $0x34] sm:$0xf]
    %v1962 = vld [vmem:[%s3 + $0x38] sm:$0xf]
    %v1963 = vld [vmem:[%s3 + $0x3c] sm:$0xf]
    %v1964 = vld [vmem:[%s3 + $0x40] sm:$0xf]
    %v1965 = vld [vmem:[%s3 + $0x44] sm:$0xf]
    %v1966 = vld [vmem:[%s3 + $0x48] sm:$0xf]
    %v1967 = vld [vmem:[%s3 + $0x4c] sm:$0xf]
    %v1968 = vld [vmem:[%s3 + $0x50] sm:$0xf]
    %v1969 = vld [vmem:[%s3 + $0x54] sm:$0xf]
    %v1970 = vld [vmem:[%s3 + $0x58] sm:$0xf]
    %v1971 = vld [vmem:[%s3 + $0x5c] sm:$0xf]
    %v1972 = vld [vmem:[%s3 + $0x60] sm:$0xf]
    %v1973 = vld [vmem:[%s3 + $0x64] sm:$0xf]
    %v1974 = vld [vmem:[%s3 + $0x68] sm:$0xf]
    %v1975 = vld [vmem:[%s3 + $0x6c] sm:$0xf]
    %v1976 = vld [vmem:[%s3 + $0x70] sm:$0xf]
    %v1977 = vld [vmem:[%s3 + $0x74] sm:$0xf]
    %v1978 = vld [vmem:[%s3 + $0x78] sm:$0xf]
    %v1979 = vld [vmem:[%s3 + $0x7c] sm:$0xf]
    %v1980 = vld [vmem:[%s3 + $0x80] sm:$0xf]
    %v1981 = vld [vmem:[%s3 + $0x84] sm:$0xf]
    %v1982 = vld [vmem:[%s3 + $0x88] sm:$0xf]
    %v1983 = vld [vmem:[%s3 + $0x8c] sm:$0xf]
    %v1984 = vld [vmem:[%s3 + $0x90] sm:$0xf]
    %v1985 = vld [vmem:[%s3 + $0x94] sm:$0xf]
    %v1986 = vld [vmem:[%s3 + $0x98] sm:$0xf]
    %v1987 = vld [vmem:[%s3 + $0x9c] sm:$0xf]
    %v1988 = vld [vmem:[%s3 + $0xa0] sm:$0xf]
    %v1989 = vld [vmem:[%s3 + $0xa4] sm:$0xf]
    %v1990 = vld [vmem:[%s3 + $0xa8] sm:$0xf]
    %v1991 = vld [vmem:[%s3 + $0xac] sm:$0xf]
    %v1992 = vld [vmem:[%s3 + $0xb0] sm:$0xf]
    %v1993 = vld [vmem:[%s3 + $0xb4] sm:$0xf]
    %v1994 = vld [vmem:[%s3 + $0xb8] sm:$0xf]
    %v1995 = vld [vmem:[%s3 + $0xbc] sm:$0xf]
    %v1996 = vld [vmem:[%s3 + $0xc0] sm:$0xf]
    %v1997 = vld [vmem:[%s3 + $0xc4] sm:$0xf]
    %v1998 = vld [vmem:[%s3 + $0xc8] sm:$0xf]
    %v1999 = vld [vmem:[%s3 + $0xcc] sm:$0xf]
    %v2000 = vld [vmem:[%s3 + $0xd0] sm:$0xf]
    %v2001 = vld [vmem:[%s3 + $0xd4] sm:$0xf]
    %v2002 = vld [vmem:[%s3 + $0xd8] sm:$0xf]
    %v2003 = vld [vmem:[%s3 + $0xdc] sm:$0xf]
    %v2004 = vld [vmem:[%s3 + $0xe0] sm:$0xf]
    %v2005 = vld [vmem:[%s3 + $0xe4] sm:$0xf]
    %v2006 = vld [vmem:[%s3 + $0xe8] sm:$0xf]
    %v2007 = vld [vmem:[%s3 + $0xec] sm:$0xf]
    %v2008 = vld [vmem:[%s3 + $0xf0] sm:$0xf]
    %v2009 = vld [vmem:[%s3 + $0xf4] sm:$0xf]
    %v2010 = vld [vmem:[%s3 + $0xf8] sm:$0xf]
    %v2011 = vld [vmem:[%s3 + $0xfc] sm:$0xf]
    %v2012 = vld [vmem:[%s4] sm:$0x1]
    %v2014 = vlaneseq
    %v2015 = vshrl.u32 %v2014, 7
    %v2016 = vsub.s32 0, %v2015
    %v2017 = vrot.slane %v2012, %v2016
    %v2083 = vunpack.c.l.b16 %v1948
    %v2084 = vunpack.c.l.b16 %v1949
    %v2085 = vunpack.c.l.b16 %v1950
    %v2086 = vunpack.c.l.b16 %v1951
    %v2087 = vunpack.c.l.b16 %v1952
    %v2088 = vunpack.c.l.b16 %v1953
    %v2089 = vunpack.c.l.b16 %v1954
    %v2090 = vunpack.c.l.b16 %v1955
    %v2091 = vunpack.c.l.b16 %v1956
    %v2092 = vunpack.c.l.b16 %v1957
    %v2093 = vunpack.c.l.b16 %v1958
    %v2094 = vunpack.c.l.b16 %v1959
    %v2095 = vunpack.c.l.b16 %v1960
    %v2096 = vunpack.c.l.b16 %v1961
    %v2097 = vunpack.c.l.b16 %v1962
    %v2098 = vunpack.c.l.b16 %v1963
    %v2099 = vunpack.c.l.b16 %v1964
    %v2100 = vunpack.c.l.b16 %v1965
    %v2101 = vunpack.c.l.b16 %v1966
    %v2102 = vunpack.c.l.b16 %v1967
    %v2103 = vunpack.c.l.b16 %v1968
    %v2104 = vunpack.c.l.b16 %v1969
    %v2105 = vunpack.c.l.b16 %v1970
    %v2106 = vunpack.c.l.b16 %v1971
    %v2107 = vunpack.c.l.b16 %v1972
    %v2108 = vunpack.c.l.b16 %v1973
    %v2109 = vunpack.c.l.b16 %v1974
    %v2110 = vunpack.c.l.b16 %v1975
    %v2111 = vunpack.c.l.b16 %v1976
    %v2112 = vunpack.c.l.b16 %v1977
    %v2113 = vunpack.c.l.b16 %v1978
    %v2114 = vunpack.c.l.b16 %v1979
    %v2115 = vunpack.c.l.b16 %v1980
    %v2116 = vunpack.c.l.b16 %v1981
    %v2117 = vunpack.c.l.b16 %v1982
    %v2118 = vunpack.c.l.b16 %v1983
    %v2119 = vunpack.c.l.b16 %v1984
    %v2120 = vunpack.c.l.b16 %v1985
    %v2121 = vunpack.c.l.b16 %v1986
    %v2122 = vunpack.c.l.b16 %v1987
    %v2123 = vunpack.c.l.b16 %v1988
    %v2124 = vunpack.c.l.b16 %v1989
    %v2125 = vunpack.c.l.b16 %v1990
    %v2126 = vunpack.c.l.b16 %v1991
    %v2127 = vunpack.c.l.b16 %v1992
    %v2128 = vunpack.c.l.b16 %v1993
    %v2129 = vunpack.c.l.b16 %v1994
    %v2130 = vunpack.c.l.b16 %v1995
    %v2131 = vunpack.c.l.b16 %v1996
    %v2132 = vunpack.c.l.b16 %v1997
    %v2133 = vunpack.c.l.b16 %v1998
    %v2134 = vunpack.c.l.b16 %v1999
    %v2135 = vunpack.c.l.b16 %v2000
    %v2136 = vunpack.c.l.b16 %v2001
    %v2137 = vunpack.c.l.b16 %v2002
    %v2138 = vunpack.c.l.b16 %v2003
    %v2139 = vunpack.c.l.b16 %v2004
    %v2140 = vunpack.c.l.b16 %v2005
    %v2141 = vunpack.c.l.b16 %v2006
    %v2142 = vunpack.c.l.b16 %v2007
    %v2143 = vunpack.c.l.b16 %v2008
    %v2144 = vunpack.c.l.b16 %v2009
    %v2145 = vunpack.c.l.b16 %v2010
    %v2146 = vunpack.c.l.b16 %v2011
    %v2147 = vpack.c.b16 %v2084, %v2083
    %v2148 = vpack.c.b16 %v2086, %v2085
    %v2149 = vpack.c.b16 %v2088, %v2087
    %v2150 = vpack.c.b16 %v2090, %v2089
    %v2151 = vpack.c.b16 %v2092, %v2091
    %v2152 = vpack.c.b16 %v2094, %v2093
    %v2153 = vpack.c.b16 %v2096, %v2095
    %v2154 = vpack.c.b16 %v2098, %v2097
    %v2155 = vpack.c.b16 %v2100, %v2099
    %v2156 = vpack.c.b16 %v2102, %v2101
    %v2157 = vpack.c.b16 %v2104, %v2103
    %v2158 = vpack.c.b16 %v2106, %v2105
    %v2159 = vpack.c.b16 %v2108, %v2107
    %v2160 = vpack.c.b16 %v2110, %v2109
    %v2161 = vpack.c.b16 %v2112, %v2111
    %v2162 = vpack.c.b16 %v2114, %v2113
    %v2163 = vpack.c.b16 %v2116, %v2115
    %v2164 = vpack.c.b16 %v2118, %v2117
    %v2165 = vpack.c.b16 %v2120, %v2119
    %v2166 = vpack.c.b16 %v2122, %v2121
    %v2167 = vpack.c.b16 %v2124, %v2123
    %v2168 = vpack.c.b16 %v2126, %v2125
    %v2169 = vpack.c.b16 %v2128, %v2127
    %v2170 = vpack.c.b16 %v2130, %v2129
    %v2171 = vpack.c.b16 %v2132, %v2131
    %v2172 = vpack.c.b16 %v2134, %v2133
    %v2173 = vpack.c.b16 %v2136, %v2135
    %v2174 = vpack.c.b16 %v2138, %v2137
    %v2175 = vpack.c.b16 %v2140, %v2139
    %v2176 = vpack.c.b16 %v2142, %v2141
    %v2177 = vpack.c.b16 %v2144, %v2143
    %v2178 = vpack.c.b16 %v2146, %v2145
    %2211 = vmatprep.subr.bf16.mxu0 0
    %2212 = vmatpush1.bf16.msra.mxu0 %v2147
    %2213 = vmatprep.subr.bf16.mxu0 0
    %2214 = vmatpush1.bf16.msra.mxu0 %v2148
    %2215 = vmatprep.subr.bf16.mxu0 0
    %2216 = vmatpush1.bf16.msra.mxu0 %v2149
    %2217 = vmatprep.subr.bf16.mxu0 0
    %2218 = vmatpush1.bf16.msra.mxu0 %v2150
    %2219 = vmatprep.subr.bf16.mxu0 0
    %2220 = vmatpush1.bf16.msra.mxu0 %v2151
    %2221 = vmatprep.subr.bf16.mxu0 0
    %2222 = vmatpush1.bf16.msra.mxu0 %v2152
    %2223 = vmatprep.subr.bf16.mxu0 0
    %2224 = vmatpush1.bf16.msra.mxu0 %v2153
    %2225 = vmatprep.subr.bf16.mxu0 0
    %2226 = vmatpush1.bf16.msra.mxu0 %v2154
    %2227 = vmatprep.subr.bf16.mxu0 0
    %2228 = vmatpush1.bf16.msra.mxu0 %v2155
    %2229 = vmatprep.subr.bf16.mxu0 0
    %2230 = vmatpush1.bf16.msra.mxu0 %v2156
    %2231 = vmatprep.subr.bf16.mxu0 0
    %2232 = vmatpush1.bf16.msra.mxu0 %v2157
    %2233 = vmatprep.subr.bf16.mxu0 0
    %2234 = vmatpush1.bf16.msra.mxu0 %v2158
    %2235 = vmatprep.subr.bf16.mxu0 0
    %2236 = vmatpush1.bf16.msra.mxu0 %v2159
    %2237 = vmatprep.subr.bf16.mxu0 0
    %2238 = vmatpush1.bf16.msra.mxu0 %v2160
    %2239 = vmatprep.subr.bf16.mxu0 0
    %2240 = vmatpush1.bf16.msra.mxu0 %v2161
    %2241 = vmatprep.subr.bf16.mxu0 0
    %2242 = vmatpush1.bf16.msra.mxu0 %v2162
    %2243 = vmatprep.mubr.bf16.mxu0 %v1945
    %2244 = vmatmul.mubr.bf16.gmra.mrb[0].mxu0 %v1944
    %v2245 = vpop.f32.mrb[0].mxu0
    %v2246 = vadd.f32 %v2017, %v2245
    %v2247 = vpop.f32.mrb[0].mxu0
    %v2248 = vpop.f32.mrb[0].mxu0
    %v2249 = vpop.f32.mrb[0].mxu0
    %2250 = vdwg.mxu0
    %2251 = vmatprep.subr.bf16.mxu0 0
    %2252 = vmatpush1.bf16.msra.mxu0 %v2163
    %2253 = vmatprep.subr.bf16.mxu0 0
    %2254 = vmatpush1.bf16.msra.mxu0 %v2164
    %2255 = vmatprep.subr.bf16.mxu0 0
    %2256 = vmatpush1.bf16.msra.mxu0 %v2165
    %2257 = vmatprep.subr.bf16.mxu0 0
    %2258 = vmatpush1.bf16.msra.mxu0 %v2166
    %2259 = vmatprep.subr.bf16.mxu0 0
    %2260 = vmatpush1.bf16.msra.mxu0 %v2167
    %2261 = vmatprep.subr.bf16.mxu0 0
    %2262 = vmatpush1.bf16.msra.mxu0 %v2168
    %2263 = vmatprep.subr.bf16.mxu0 0
    %2264 = vmatpush1.bf16.msra.mxu0 %v2169
    %2265 = vmatprep.subr.bf16.mxu0 0
    %2266 = vmatpush1.bf16.msra.mxu0 %v2170
    %2267 = vmatprep.subr.bf16.mxu0 0
    %2268 = vmatpush1.bf16.msra.mxu0 %v2171
    %2269 = vmatprep.subr.bf16.mxu0 0
    %2270 = vmatpush1.bf16.msra.mxu0 %v2172
    %2271 = vmatprep.subr.bf16.mxu0 0
    %2272 = vmatpush1.bf16.msra.mxu0 %v2173
    %2273 = vmatprep.subr.bf16.mxu0 0
    %2274 = vmatpush1.bf16.msra.mxu0 %v2174
    %2275 = vmatprep.subr.bf16.mxu0 0
    %2276 = vmatpush1.bf16.msra.mxu0 %v2175
    %2277 = vmatprep.subr.bf16.mxu0 0
    %2278 = vmatpush1.bf16.msra.mxu0 %v2176
    %2279 = vmatprep.subr.bf16.mxu0 0
    %2280 = vmatpush1.bf16.msra.mxu0 %v2177
    %2281 = vmatprep.subr.bf16.mxu0 0
    %2282 = vmatpush1.bf16.msra.mxu0 %v2178
    %2283 = vmatprep.mubr.bf16.mxu0 %v1947
    %2284 = vmatmul.mubr.bf16.gmra.mrb[0].mxu0 %v1946
    %v2285 = vpop.f32.mrb[0].mxu0
    %v2286 = vadd.f32 %v2246, %v2285
    %v2287 = vpop.f32.mrb[0].mxu0
    %v2288 = vpop.f32.mrb[0].mxu0
    %v2289 = vpop.f32.mrb[0].mxu0
    %2290 = vdwg.mxu0
    %2291 = vst [vmem:[#allocation2] sm:$0xff] %v2286
    // Predicated region
    $region22: #{fc_forward.1} parent=1 // pred_check
      _
    $region23: #{fc_forward.1} parent=1 // pred_check_branch
      %2293 = sbr.rel (0) target = $region25
    $region24: #{fc_forward.1} parent=1 // pred_region
      %s2295 = ssub.s32 128, 128
      %2296 = vsyncadd [#allocation3], %s2295
      %s2298 = sshll.u32 [#allocation2], 4
      %s2299 = int_to_ptr.vmem [resolvable:$true] %s2298
      %2301 = dma.vmem_to_hbm [thread:$0]  %s2299, 128, %s5, [#allocation3]
    $region25: #{fc_forward.1} parent=1 // pred_fallthru
      _
    // Predicated region
    $region26: #{fc_forward.1} parent=1 // pred_check
      _
    $region27: #{fc_forward.1} parent=1 // pred_check_branch
      %2303 = sbr.rel (0) target = $region29
    $region28: #{fc_forward.1} parent=1 // pred_region
      %2304 = dma.done [#allocation3], 128
    $region29: #{fc_forward.1} parent=1 // pred_fallthru
      _
    %2305 = vsyncpa [#allocation3], 1

</llo_original>
